<compile_context>
chip_gen: v5e
topology: v5e:2x2
jax: 0.10.0
libtpu: 0.0.40
codegen_flags: <defaults>
</compile_context>

<pallas_src>
import functools

import jax
import jax.numpy as jnp
from jax.experimental import pallas as pl
from jax.experimental.pallas import tpu as pltpu


def _rnn_kernel(obs_ref, w_in_ref, w_h_ref, b_h_ref, w_out_ref, b_out_ref,
                h0_ref, o0_ref,
                out_ref, h_out_ref, o_out_ref,
                p_sc, *, alpha, unroll):
    """One batch-block of the RNN.

    obs_ref : (T, Bc, obs_dim)  time-major observations (VMEM block)
    p_sc    : (T, Bc, H)        VMEM scratch: hoisted input projection
    out_ref : (T, Bc, A_pad)    lane-dense output block (A padded to 128)
    """
    T, Bc, obs_dim = obs_ref.shape
    H = w_h_ref.shape[0]
    A_pad = w_out_ref.shape[1]
    a = jnp.float32(alpha)

    # ---- Phase 1 (time-parallel, off the serial path): input projection for
    # all timesteps in one MXU pass:  (T*Bc, obs) @ (obs, H) + b_h.
    x = obs_ref[...].reshape(T * Bc, obs_dim)
    p = jnp.dot(x, w_in_ref[...],
                preferred_element_type=jnp.float32) + b_h_ref[...]
    p_sc[...] = p.reshape(T, Bc, H)

    # Loop invariants, loaded / broadcast once (JAX does not CSE broadcasts).
    w_h = w_h_ref[...]
    w_out = w_out_ref[...]
    b_out = jnp.broadcast_to(b_out_ref[...], (Bc, A_pad))

    # ---- Phase 2 (serial): fused recurrence.  Only h @ W_h sits on the
    # critical dependency chain; the output projection + o low-pass are
    # independent of the NEXT h, so they execute in the chain's slack.
    # Each output row-slab is written exactly once (no read-back).
    def step(t, carry):
        h, o = carry
        pre_h = p_sc[t] + jnp.dot(h, w_h, preferred_element_type=jnp.float32)
        h = h + a * (jax.nn.sigmoid(pre_h) - h)                    # FMA form
        pre_o = jnp.dot(h, w_out, preferred_element_type=jnp.float32) + b_out
        o = o + a * (jax.nn.sigmoid(pre_o) - o)                    # FMA form
        out_ref[t] = o
        return (h, o)

    h_fin, o_fin = jax.lax.fori_loop(
        0, T, step, (h0_ref[...], o0_ref[...]), unroll=unroll)

    h_out_ref[...] = h_fin
    o_out_ref[...] = o_fin


def _round_up(x, m):
    return -(-x // m) * m


def _block_bytes(shape, itemsize=4):
    """Approx VMEM bytes of one (8,128)-tiled f32 block of `shape`."""
    lead = 1
    for d in shape[:-2]:
        lead *= d
    rows = _round_up(shape[-2], 8)
    cols = _round_up(shape[-1], 128)
    return lead * rows * cols * itemsize


def numpy_style_rnn_policy(obs, W_in, W_h, b_h, W_out, b_out, *,
                           alpha=0.1, hidden_state=None,
                           num_batch_blocks=None):
    """Forward pass of NumpyStyleRNNPolicy (activation = sigmoid).

    obs: (B, T, obs_dim) or (B, obs_dim) float32.
    Returns (out[B,T,A] (or [B,A] for 2-D obs), (h[1,B,H], o[1,B,A])).

    num_batch_blocks: the batch is split into this many blocks along a
      "parallel" grid axis (v7x runs the blocks on its two TensorCores).
      Default: auto — 2 only when the batch is large enough that splitting is
      also throughput-neutral on single-TensorCore chips (v5e/v6e).
    """
    single = obs.ndim == 2
    if single:
        obs = obs[:, None, :]
    B, T, obs_dim = obs.shape
    H, A = W_in.shape[0], W_out.shape[0]

    # Batch blocking / padding (each block must be a multiple of 8 sublanes).
    if num_batch_blocks is None:
        num_batch_blocks = 2 if B >= 128 else 1
    n_blk = max(1, int(num_batch_blocks))
    B_pad = _round_up(max(B, 1), 8 * n_blk)
    Bc = B_pad // n_blk

    # Lane-dense output: pad the action dim up to a multiple of 128 so every
    # output store is an unmasked full-lane vst (sliced off in the wrapper).
    A_pad = _round_up(A, 128)

    # Time-major obs for the kernel.
    # TODO(synk): the (B,T)<->(T,B) relayout of obs/out stays in XLA (one
    # fused pass each); in-kernel major-dim transposes / strided sublane loads
    # are not reliably lowered by Mosaic, so they are not moved into the kernel.
    obs_t = jnp.transpose(obs.astype(jnp.float32), (1, 0, 2))       # (T, B, obs)
    if B_pad != B:
        obs_t = jnp.pad(obs_t, ((0, 0), (0, B_pad - B), (0, 0)))

    # Initial state handling (mirrors the PyTorch module's forward()).
    if hidden_state is None:
        h0 = jnp.zeros((B, H), jnp.float32)
        o0 = jnp.zeros((B, A), jnp.float32)
    elif isinstance(hidden_state, tuple) and len(hidden_state) == 2:
        h_state, o_state = hidden_state
        h0 = (h_state[0] if h_state.ndim == 3 else h_state).astype(jnp.float32)
        o0 = (o_state[0] if o_state.ndim == 3 else o_state).astype(jnp.float32)
    else:
        h0 = (hidden_state[0] if hidden_state.ndim == 3
              else hidden_state).astype(jnp.float32)
        o0 = jnp.zeros((B, A), jnp.float32)
    h0 = jnp.pad(h0, ((0, B_pad - B), (0, 0)))
    o0 = jnp.pad(o0, ((0, B_pad - B), (0, A_pad - A)))

    # Pre-transposed / lane-padded weights so in-kernel matmuls are x @ W.
    w_in_t = W_in.T.astype(jnp.float32)                             # (obs, H)
    w_h_t = W_h.T.astype(jnp.float32)                               # (H, H)
    w_out_t = jnp.pad(W_out.T.astype(jnp.float32),
                      ((0, 0), (0, A_pad - A)))                     # (H, A_pad)
    b_h2 = b_h.reshape(1, H).astype(jnp.float32)
    b_out2 = jnp.pad(b_out.reshape(1, A).astype(jnp.float32),
                     ((0, 0), (0, A_pad - A)))                      # (1, A_pad)

    # Explicit VMEM budget: double-buffered in/out blocks + scratch + margin.
    in_blocks = [(T, Bc, obs_dim), (obs_dim, H), (H, H), (1, H),
                 (H, A_pad), (1, A_pad), (Bc, H), (Bc, A_pad)]
    out_blocks = [(T, Bc, A_pad), (Bc, H), (Bc, A_pad)]
    est = (2 * sum(_block_bytes(s) for s in in_blocks)
           + 2 * sum(_block_bytes(s) for s in out_blocks)
           + _block_bytes((T, Bc, H)))
    vmem_limit = int(min(128 * 1024 * 1024, max(32 * 1024 * 1024, 2 * est)))
    # NOTE: for very large T*Bc this single-resident design would need
    # T-chunking of Phase 1 / the out block (v7x has only 64 MiB physical
    # VMEM); not required at these sizes.

    kernel = functools.partial(_rnn_kernel, alpha=float(alpha),
                               unroll=max(1, min(8, T)))

    out3, h_fin, o_fin = pl.pallas_call(
        kernel,
        out_shape=(
            jax.ShapeDtypeStruct((T, B_pad, A_pad), jnp.float32),
            jax.ShapeDtypeStruct((B_pad, H), jnp.float32),
            jax.ShapeDtypeStruct((B_pad, A_pad), jnp.float32),
        ),
        grid_spec=pltpu.PrefetchScalarGridSpec(
            num_scalar_prefetch=0,
            grid=(n_blk,),
            in_specs=[
                pl.BlockSpec((T, Bc, obs_dim), lambda c: (0, c, 0)),  # obs
                pl.BlockSpec((obs_dim, H), lambda c: (0, 0)),         # W_in^T
                pl.BlockSpec((H, H), lambda c: (0, 0)),               # W_h^T
                pl.BlockSpec((1, H), lambda c: (0, 0)),               # b_h
                pl.BlockSpec((H, A_pad), lambda c: (0, 0)),           # W_out^T
                pl.BlockSpec((1, A_pad), lambda c: (0, 0)),           # b_out
                pl.BlockSpec((Bc, H), lambda c: (c, 0)),              # h0
                pl.BlockSpec((Bc, A_pad), lambda c: (c, 0)),          # o0
            ],
            out_specs=[
                pl.BlockSpec((T, Bc, A_pad), lambda c: (0, c, 0)),    # out
                pl.BlockSpec((Bc, H), lambda c: (c, 0)),              # h_new
                pl.BlockSpec((Bc, A_pad), lambda c: (c, 0)),          # o_new
            ],
            scratch_shapes=[pltpu.VMEM((T, Bc, H), jnp.float32)],     # p_sc
        ),
        compiler_params=pltpu.CompilerParams(
            dimension_semantics=("parallel",),
            vmem_limit_bytes=vmem_limit,
        ),
    )(obs_t, w_in_t, w_h_t, b_h2, w_out_t, b_out2, h0, o0)

    out = jnp.transpose(out3[:, :B, :A], (1, 0, 2))                  # (B, T, A)
    if single:
        out = out[:, 0, :]
    return out, (h_fin[:B][None], o_fin[:B, :A][None])


def _xavier_uniform(key, shape):
    fan_out, fan_in = shape
    bound = (6.0 / (fan_in + fan_out)) ** 0.5
    return jax.random.uniform(key, shape, jnp.float32, -bound, bound)


def _reference(obs, W_in, W_h, b_h, W_out, b_out, alpha, h0=None, o0=None):
    B, T, _ = obs.shape
    H, A = W_in.shape[0], W_out.shape[0]
    h = jnp.zeros((B, H), jnp.float32) if h0 is None else h0
    o = jnp.zeros((B, A), jnp.float32) if o0 is None else o0

    def step(carry, x_t):
        h, o = carry
        pre_h = x_t @ W_in.T + h @ W_h.T + b_h
        h = (1 - alpha) * h + alpha * jax.nn.sigmoid(pre_h)
        pre_o = h @ W_out.T + b_out
        o = (1 - alpha) * o + alpha * jax.nn.sigmoid(pre_o)
        return (h, o), o

    (h, o), outs = jax.lax.scan(step, (h, o), jnp.transpose(obs, (1, 0, 2)))
    return jnp.transpose(outs, (1, 0, 2)), (h[None], o[None])


if __name__ == "__main__":
    obs_dim, hidden_size, action_dim = 16, 32, 8
    alpha = 0.1

    key = jax.random.PRNGKey(0)
    k_obs, k_obs2, k_in, k_h, k_out = jax.random.split(key, 5)

    W_in = _xavier_uniform(k_in, (hidden_size, obs_dim))
    W_h = _xavier_uniform(k_h, (hidden_size, hidden_size))
    b_h = jnp.zeros((hidden_size,), jnp.float32)
    W_out = _xavier_uniform(k_out, (action_dim, hidden_size))
    b_out = jnp.zeros((action_dim,), jnp.float32)

    # Case 1: B=16, T=8, explicit 2-block batch split (v7x two-TensorCore
    # path; runs sequentially but correctly on single-core chips).
    B, T = 16, 8
    obs = jax.random.normal(k_obs, (B, T, obs_dim), jnp.float32)
    out, (h_new, o_new) = numpy_style_rnn_policy(
        obs, W_in, W_h, b_h, W_out, b_out, alpha=alpha, num_batch_blocks=2)
    jax.block_until_ready(out)
    ref_out, (ref_h, ref_o) = _reference(obs, W_in, W_h, b_h, W_out, b_out, alpha)
    assert out.shape == (B, T, action_dim)
    assert h_new.shape == (1, B, hidden_size) and o_new.shape == (1, B, action_dim)
    assert jnp.allclose(out, ref_out, atol=1e-5)
    assert jnp.allclose(h_new, ref_h, atol=1e-5)
    assert jnp.allclose(o_new, ref_o, atol=1e-5)

    # Case 2: continue from the returned hidden state (tuple-state branch).
    obs2 = jax.random.normal(k_obs2, (B, T, obs_dim), jnp.float32)
    out2, (h2, o2) = numpy_style_rnn_policy(
        obs2, W_in, W_h, b_h, W_out, b_out, alpha=alpha,
        hidden_state=(h_new, o_new))
    jax.block_until_ready(out2)
    ref_out2, (ref_h2, ref_o2) = _reference(
        obs2, W_in, W_h, b_h, W_out, b_out, alpha, h0=ref_h[0], o0=ref_o[0])
    assert jnp.allclose(out2, ref_out2, atol=1e-5)
    assert jnp.allclose(h2, ref_h2, atol=1e-5)
    assert jnp.allclose(o2, ref_o2, atol=1e-5)

    # Case 3: ragged batch (B=3 padded to 8, single block) and the 2-D
    # single-timestep path of the module.
    obs3 = obs[:3]
    out3_, (h3, o3) = numpy_style_rnn_policy(
        obs3, W_in, W_h, b_h, W_out, b_out, alpha=alpha)
    jax.block_until_ready(out3_)
    ref_out3, (ref_h3, ref_o3) = _reference(
        obs3, W_in, W_h, b_h, W_out, b_out, alpha)
    assert jnp.allclose(out3_, ref_out3, atol=1e-5)
    assert jnp.allclose(h3, ref_h3, atol=1e-5)
    assert jnp.allclose(o3, ref_o3, atol=1e-5)

    out1, (h1, o1) = numpy_style_rnn_policy(
        obs3[:, 0, :], W_in, W_h, b_h, W_out, b_out, alpha=alpha)
    jax.block_until_ready(out1)
    assert out1.shape == (3, action_dim)
    assert jnp.allclose(out1, ref_out3[:, 0, :], atol=1e-5)

    print("KERNEL_OK")
</pallas_src>

<mosaic_0001>
module attributes {stable_mosaic.version = 11 : i64} {
  func.func @_rnn_kernel(%arg0: i32, %arg1: memref<8x8x16xf32, #tpu.memory_space<vmem>>, %arg2: memref<16x32xf32, #tpu.memory_space<vmem>>, %arg3: memref<32x32xf32, #tpu.memory_space<vmem>>, %arg4: memref<1x32xf32, #tpu.memory_space<vmem>>, %arg5: memref<32x128xf32, #tpu.memory_space<vmem>>, %arg6: memref<1x128xf32, #tpu.memory_space<vmem>>, %arg7: memref<8x32xf32, #tpu.memory_space<vmem>>, %arg8: memref<8x128xf32, #tpu.memory_space<vmem>>, %arg9: memref<8x8x128xf32, #tpu.memory_space<vmem>>, %arg10: memref<8x32xf32, #tpu.memory_space<vmem>>, %arg11: memref<8x128xf32, #tpu.memory_space<vmem>>, %arg12: memref<8x8x32xf32, #tpu.memory_space<vmem>>) attributes {dimension_semantics = [#tpu.dimension_semantics<parallel>], iteration_bounds = array<i64: 2>, scalar_prefetch = 0 : i64, scratch_operands = 1 : i64, tpu.core_type = #tpu.core_type<tc>, window_params = [{transform_indices = @transform_0, window_bounds = array<i64: 8, 8, 16>}, {pipeline_mode = #tpu.pipeline_mode<synchronous>, transform_indices = @transform_1, window_bounds = array<i64: 16, 32>}, {pipeline_mode = #tpu.pipeline_mode<synchronous>, transform_indices = @transform_2, window_bounds = array<i64: 32, 32>}, {pipeline_mode = #tpu.pipeline_mode<synchronous>, transform_indices = @transform_3, window_bounds = array<i64: 1, 32>}, {pipeline_mode = #tpu.pipeline_mode<synchronous>, transform_indices = @transform_4, window_bounds = array<i64: 32, 128>}, {pipeline_mode = #tpu.pipeline_mode<synchronous>, transform_indices = @transform_5, window_bounds = array<i64: 1, 128>}, {transform_indices = @transform_6, window_bounds = array<i64: 8, 32>}, {transform_indices = @transform_7, window_bounds = array<i64: 8, 128>}, {transform_indices = @transform_8, window_bounds = array<i64: 8, 8, 128>}, {transform_indices = @transform_9, window_bounds = array<i64: 8, 32>}, {transform_indices = @transform_10, window_bounds = array<i64: 8, 128>}]} {
    %c0 = arith.constant 0 : index
    %c0_0 = arith.constant 0 : index
    %c0_1 = arith.constant 0 : index
    %0 = vector.load %arg1[%c0, %c0_0, %c0_1] : memref<8x8x16xf32, #tpu.memory_space<vmem>>, vector<8x8x16xf32>
    %1 = vector.shape_cast %0 : vector<8x8x16xf32> to vector<64x16xf32>
    %c0_2 = arith.constant 0 : index
    %c0_3 = arith.constant 0 : index
    %2 = vector.load %arg2[%c0_2, %c0_3] : memref<16x32xf32, #tpu.memory_space<vmem>>, vector<16x32xf32>
    %cst = arith.constant dense<0.000000e+00> : vector<64x32xf32>
    %3 = tpu.matmul %1, %2, %cst {dimension_numbers = #tpu.dot_dimension_numbers<[1], [0], [0], [1], [0, 0, 1, 1], [], []>} : vector<64x16xf32>, vector<16x32xf32>, vector<64x32xf32> -> vector<64x32xf32>
    %c0_4 = arith.constant 0 : index
    %c0_5 = arith.constant 0 : index
    %4 = vector.load %arg4[%c0_4, %c0_5] : memref<1x32xf32, #tpu.memory_space<vmem>>, vector<1x32xf32>
    %5 = vector.broadcast %4 : vector<1x32xf32> to vector<64x32xf32>
    %6 = arith.addf %3, %5 : vector<64x32xf32>
    %7 = vector.shape_cast %6 : vector<64x32xf32> to vector<8x8x32xf32>
    %c0_6 = arith.constant 0 : index
    %c0_7 = arith.constant 0 : index
    %c0_8 = arith.constant 0 : index
    %8 = vector.load %arg12[%c0_6, %c0_7, %c0_8] : memref<8x8x32xf32, #tpu.memory_space<vmem>>, vector<8x8x32xf32>
    tpu.vector_store %arg12[%c0_6, %c0_7, %c0_8], %7 {strides = array<i32>} : memref<8x8x32xf32, #tpu.memory_space<vmem>>, vector<8x8x32xf32>,
    %c0_9 = arith.constant 0 : index
    %c0_10 = arith.constant 0 : index
    %9 = vector.load %arg3[%c0_9, %c0_10] : memref<32x32xf32, #tpu.memory_space<vmem>>, vector<32x32xf32>
    %c0_11 = arith.constant 0 : index
    %c0_12 = arith.constant 0 : index
    %10 = vector.load %arg5[%c0_11, %c0_12] : memref<32x128xf32, #tpu.memory_space<vmem>>, vector<32x128xf32>
    %c0_13 = arith.constant 0 : index
    %c0_14 = arith.constant 0 : index
    %11 = vector.load %arg6[%c0_13, %c0_14] : memref<1x128xf32, #tpu.memory_space<vmem>>, vector<1x128xf32>
    %12 = vector.shape_cast %11 : vector<1x128xf32> to vector<1x128xf32>
    %13 = vector.broadcast %12 : vector<1x128xf32> to vector<8x128xf32>
    %c0_15 = arith.constant 0 : index
    %c0_16 = arith.constant 0 : index
    %14 = vector.load %arg7[%c0_15, %c0_16] : memref<8x32xf32, #tpu.memory_space<vmem>>, vector<8x32xf32>
    %c0_17 = arith.constant 0 : index
    %c0_18 = arith.constant 0 : index
    %15 = vector.load %arg8[%c0_17, %c0_18] : memref<8x128xf32, #tpu.memory_space<vmem>>, vector<8x128xf32>
    %cst_19 = arith.constant 1.000000e-01 : f32
    %c0_i32 = arith.constant 0 : i32
    %16 = arith.index_cast %c0_i32 : i32 to index
    %c0_20 = arith.constant 0 : index
    %c0_21 = arith.constant 0 : index
    %17 = vector.load %arg12[%16, %c0_20, %c0_21] : memref<8x8x32xf32, #tpu.memory_space<vmem>>, vector<1x8x32xf32>
    %18 = vector.shape_cast %17 : vector<1x8x32xf32> to vector<8x32xf32>
    %cst_22 = arith.constant dense<0.000000e+00> : vector<8x32xf32>
    %19 = tpu.matmul %14, %9, %cst_22 {dimension_numbers = #tpu.dot_dimension_numbers<[1], [0], [0], [1], [0, 0, 1, 1], [], []>} : vector<8x32xf32>, vector<32x32xf32>, vector<8x32xf32> -> vector<8x32xf32>
    %20 = arith.addf %18, %19 : vector<8x32xf32>
    %21 = arith.negf %20 : vector<8x32xf32>
    %22 = math.exp %21 : vector<8x32xf32>
    %cst_23 = arith.constant 1.000000e+00 : f32
    %23 = vector.broadcast %cst_23 : f32 to vector<8x32xf32>
    %24 = arith.addf %23, %22 : vector<8x32xf32>
    %25 = arith.divf %23, %24 : vector<8x32xf32>
    %26 = arith.subf %25, %14 : vector<8x32xf32>
    %27 = vector.broadcast %cst_19 : f32 to vector<8x32xf32>
    %28 = arith.mulf %27, %26 : vector<8x32xf32>
    %29 = arith.addf %14, %28 : vector<8x32xf32>
    %cst_24 = arith.constant dense<0.000000e+00> : vector<8x128xf32>
    %30 = tpu.matmul %29, %10, %cst_24 {dimension_numbers = #tpu.dot_dimension_numbers<[1], [0], [0], [1], [0, 0, 1, 1], [], []>} : vector<8x32xf32>, vector<32x128xf32>, vector<8x128xf32> -> vector<8x128xf32>
    %31 = arith.addf %30, %13 : vector<8x128xf32>
    %32 = arith.negf %31 : vector<8x128xf32>
    %33 = math.exp %32 : vector<8x128xf32>
    %cst_25 = arith.constant 1.000000e+00 : f32
    %34 = vector.broadcast %cst_25 : f32 to vector<8x128xf32>
    %35 = arith.addf %34, %33 : vector<8x128xf32>
    %36 = arith.divf %34, %35 : vector<8x128xf32>
    %37 = arith.subf %36, %15 : vector<8x128xf32>
    %38 = vector.broadcast %cst_19 : f32 to vector<8x128xf32>
    %39 = arith.mulf %38, %37 : vector<8x128xf32>
    %40 = arith.addf %15, %39 : vector<8x128xf32>
    %41 = arith.index_cast %c0_i32 : i32 to index
    %c0_26 = arith.constant 0 : index
    %c0_27 = arith.constant 0 : index
    %42 = vector.load %arg9[%41, %c0_26, %c0_27] : memref<8x8x128xf32, #tpu.memory_space<vmem>>, vector<1x8x128xf32>
    %43 = vector.shape_cast %42 : vector<1x8x128xf32> to vector<8x128xf32>
    %44 = vector.shape_cast %40 : vector<8x128xf32> to vector<1x8x128xf32>
    tpu.vector_store %arg9[%41, %c0_26, %c0_27], %44 {strides = array<i32>} : memref<8x8x128xf32, #tpu.memory_space<vmem>>, vector<1x8x128xf32>,
    %c1_i32 = arith.constant 1 : i32
    %45 = arith.index_cast %c1_i32 : i32 to index
    %c0_28 = arith.constant 0 : index
    %c0_29 = arith.constant 0 : index
    %46 = vector.load %arg12[%45, %c0_28, %c0_29] : memref<8x8x32xf32, #tpu.memory_space<vmem>>, vector<1x8x32xf32>
    %47 = vector.shape_cast %46 : vector<1x8x32xf32> to vector<8x32xf32>
    %cst_30 = arith.constant dense<0.000000e+00> : vector<8x32xf32>
    %48 = tpu.matmul %29, %9, %cst_30 {dimension_numbers = #tpu.dot_dimension_numbers<[1], [0], [0], [1], [0, 0, 1, 1], [], []>} : vector<8x32xf32>, vector<32x32xf32>, vector<8x32xf32> -> vector<8x32xf32>
    %49 = arith.addf %47, %48 : vector<8x32xf32>
    %50 = arith.negf %49 : vector<8x32xf32>
    %51 = math.exp %50 : vector<8x32xf32>
    %cst_31 = arith.constant 1.000000e+00 : f32
    %52 = vector.broadcast %cst_31 : f32 to vector<8x32xf32>
    %53 = arith.addf %52, %51 : vector<8x32xf32>
    %54 = arith.divf %52, %53 : vector<8x32xf32>
    %55 = arith.subf %54, %29 : vector<8x32xf32>
    %56 = vector.broadcast %cst_19 : f32 to vector<8x32xf32>
    %57 = arith.mulf %56, %55 : vector<8x32xf32>
    %58 = arith.addf %29, %57 : vector<8x32xf32>
    %cst_32 = arith.constant dense<0.000000e+00> : vector<8x128xf32>
    %59 = tpu.matmul %58, %10, %cst_32 {dimension_numbers = #tpu.dot_dimension_numbers<[1], [0], [0], [1], [0, 0, 1, 1], [], []>} : vector<8x32xf32>, vector<32x128xf32>, vector<8x128xf32> -> vector<8x128xf32>
    %60 = arith.addf %59, %13 : vector<8x128xf32>
    %61 = arith.negf %60 : vector<8x128xf32>
    %62 = math.exp %61 : vector<8x128xf32>
    %cst_33 = arith.constant 1.000000e+00 : f32
    %63 = vector.broadcast %cst_33 : f32 to vector<8x128xf32>
    %64 = arith.addf %63, %62 : vector<8x128xf32>
    %65 = arith.divf %63, %64 : vector<8x128xf32>
    %66 = arith.subf %65, %40 : vector<8x128xf32>
    %67 = vector.broadcast %cst_19 : f32 to vector<8x128xf32>
    %68 = arith.mulf %67, %66 : vector<8x128xf32>
    %69 = arith.addf %40, %68 : vector<8x128xf32>
    %70 = arith.index_cast %c1_i32 : i32 to index
    %c0_34 = arith.constant 0 : index
    %c0_35 = arith.constant 0 : index
    %71 = vector.load %arg9[%70, %c0_34, %c0_35] : memref<8x8x128xf32, #tpu.memory_space<vmem>>, vector<1x8x128xf32>
    %72 = vector.shape_cast %71 : vector<1x8x128xf32> to vector<8x128xf32>
    %73 = vector.shape_cast %69 : vector<8x128xf32> to vector<1x8x128xf32>
    tpu.vector_store %arg9[%70, %c0_34, %c0_35], %73 {strides = array<i32>} : memref<8x8x128xf32, #tpu.memory_space<vmem>>, vector<1x8x128xf32>,
    %c2_i32 = arith.constant 2 : i32
    %74 = arith.index_cast %c2_i32 : i32 to index
    %c0_36 = arith.constant 0 : index
    %c0_37 = arith.constant 0 : index
    %75 = vector.load %arg12[%74, %c0_36, %c0_37] : memref<8x8x32xf32, #tpu.memory_space<vmem>>, vector<1x8x32xf32>
    %76 = vector.shape_cast %75 : vector<1x8x32xf32> to vector<8x32xf32>
    %cst_38 = arith.constant dense<0.000000e+00> : vector<8x32xf32>
    %77 = tpu.matmul %58, %9, %cst_38 {dimension_numbers = #tpu.dot_dimension_numbers<[1], [0], [0], [1], [0, 0, 1, 1], [], []>} : vector<8x32xf32>, vector<32x32xf32>, vector<8x32xf32> -> vector<8x32xf32>
    %78 = arith.addf %76, %77 : vector<8x32xf32>
    %79 = arith.negf %78 : vector<8x32xf32>
    %80 = math.exp %79 : vector<8x32xf32>
    %cst_39 = arith.constant 1.000000e+00 : f32
    %81 = vector.broadcast %cst_39 : f32 to vector<8x32xf32>
    %82 = arith.addf %81, %80 : vector<8x32xf32>
    %83 = arith.divf %81, %82 : vector<8x32xf32>
    %84 = arith.subf %83, %58 : vector<8x32xf32>
    %85 = vector.broadcast %cst_19 : f32 to vector<8x32xf32>
    %86 = arith.mulf %85, %84 : vector<8x32xf32>
    %87 = arith.addf %58, %86 : vector<8x32xf32>
    %cst_40 = arith.constant dense<0.000000e+00> : vector<8x128xf32>
    %88 = tpu.matmul %87, %10, %cst_40 {dimension_numbers = #tpu.dot_dimension_numbers<[1], [0], [0], [1], [0, 0, 1, 1], [], []>} : vector<8x32xf32>, vector<32x128xf32>, vector<8x128xf32> -> vector<8x128xf32>
    %89 = arith.addf %88, %13 : vector<8x128xf32>
    %90 = arith.negf %89 : vector<8x128xf32>
    %91 = math.exp %90 : vector<8x128xf32>
    %cst_41 = arith.constant 1.000000e+00 : f32
    %92 = vector.broadcast %cst_41 : f32 to vector<8x128xf32>
    %93 = arith.addf %92, %91 : vector<8x128xf32>
    %94 = arith.divf %92, %93 : vector<8x128xf32>
    %95 = arith.subf %94, %69 : vector<8x128xf32>
    %96 = vector.broadcast %cst_19 : f32 to vector<8x128xf32>
    %97 = arith.mulf %96, %95 : vector<8x128xf32>
    %98 = arith.addf %69, %97 : vector<8x128xf32>
    %99 = arith.index_cast %c2_i32 : i32 to index
    %c0_42 = arith.constant 0 : index
    %c0_43 = arith.constant 0 : index
    %100 = vector.load %arg9[%99, %c0_42, %c0_43] : memref<8x8x128xf32, #tpu.memory_space<vmem>>, vector<1x8x128xf32>
    %101 = vector.shape_cast %100 : vector<1x8x128xf32> to vector<8x128xf32>
    %102 = vector.shape_cast %98 : vector<8x128xf32> to vector<1x8x128xf32>
    tpu.vector_store %arg9[%99, %c0_42, %c0_43], %102 {strides = array<i32>} : memref<8x8x128xf32, #tpu.memory_space<vmem>>, vector<1x8x128xf32>,
    %c3_i32 = arith.constant 3 : i32
    %103 = arith.index_cast %c3_i32 : i32 to index
    %c0_44 = arith.constant 0 : index
    %c0_45 = arith.constant 0 : index
    %104 = vector.load %arg12[%103, %c0_44, %c0_45] : memref<8x8x32xf32, #tpu.memory_space<vmem>>, vector<1x8x32xf32>
    %105 = vector.shape_cast %104 : vector<1x8x32xf32> to vector<8x32xf32>
    %cst_46 = arith.constant dense<0.000000e+00> : vector<8x32xf32>
    %106 = tpu.matmul %87, %9, %cst_46 {dimension_numbers = #tpu.dot_dimension_numbers<[1], [0], [0], [1], [0, 0, 1, 1], [], []>} : vector<8x32xf32>, vector<32x32xf32>, vector<8x32xf32> -> vector<8x32xf32>
    %107 = arith.addf %105, %106 : vector<8x32xf32>
    %108 = arith.negf %107 : vector<8x32xf32>
    %109 = math.exp %108 : vector<8x32xf32>
    %cst_47 = arith.constant 1.000000e+00 : f32
    %110 = vector.broadcast %cst_47 : f32 to vector<8x32xf32>
    %111 = arith.addf %110, %109 : vector<8x32xf32>
    %112 = arith.divf %110, %111 : vector<8x32xf32>
    %113 = arith.subf %112, %87 : vector<8x32xf32>
    %114 = vector.broadcast %cst_19 : f32 to vector<8x32xf32>
    %115 = arith.mulf %114, %113 : vector<8x32xf32>
    %116 = arith.addf %87, %115 : vector<8x32xf32>
    %cst_48 = arith.constant dense<0.000000e+00> : vector<8x128xf32>
    %117 = tpu.matmul %116, %10, %cst_48 {dimension_numbers = #tpu.dot_dimension_numbers<[1], [0], [0], [1], [0, 0, 1, 1], [], []>} : vector<8x32xf32>, vector<32x128xf32>, vector<8x128xf32> -> vector<8x128xf32>
    %118 = arith.addf %117, %13 : vector<8x128xf32>
    %119 = arith.negf %118 : vector<8x128xf32>
    %120 = math.exp %119 : vector<8x128xf32>
    %cst_49 = arith.constant 1.000000e+00 : f32
    %121 = vector.broadcast %cst_49 : f32 to vector<8x128xf32>
    %122 = arith.addf %121, %120 : vector<8x128xf32>
    %123 = arith.divf %121, %122 : vector<8x128xf32>
    %124 = arith.subf %123, %98 : vector<8x128xf32>
    %125 = vector.broadcast %cst_19 : f32 to vector<8x128xf32>
    %126 = arith.mulf %125, %124 : vector<8x128xf32>
    %127 = arith.addf %98, %126 : vector<8x128xf32>
    %128 = arith.index_cast %c3_i32 : i32 to index
    %c0_50 = arith.constant 0 : index
    %c0_51 = arith.constant 0 : index
    %129 = vector.load %arg9[%128, %c0_50, %c0_51] : memref<8x8x128xf32, #tpu.memory_space<vmem>>, vector<1x8x128xf32>
    %130 = vector.shape_cast %129 : vector<1x8x128xf32> to vector<8x128xf32>
    %131 = vector.shape_cast %127 : vector<8x128xf32> to vector<1x8x128xf32>
    tpu.vector_store %arg9[%128, %c0_50, %c0_51], %131 {strides = array<i32>} : memref<8x8x128xf32, #tpu.memory_space<vmem>>, vector<1x8x128xf32>,
    %c4_i32 = arith.constant 4 : i32
    %132 = arith.index_cast %c4_i32 : i32 to index
    %c0_52 = arith.constant 0 : index
    %c0_53 = arith.constant 0 : index
    %133 = vector.load %arg12[%132, %c0_52, %c0_53] : memref<8x8x32xf32, #tpu.memory_space<vmem>>, vector<1x8x32xf32>
    %134 = vector.shape_cast %133 : vector<1x8x32xf32> to vector<8x32xf32>
    %cst_54 = arith.constant dense<0.000000e+00> : vector<8x32xf32>
    %135 = tpu.matmul %116, %9, %cst_54 {dimension_numbers = #tpu.dot_dimension_numbers<[1], [0], [0], [1], [0, 0, 1, 1], [], []>} : vector<8x32xf32>, vector<32x32xf32>, vector<8x32xf32> -> vector<8x32xf32>
    %136 = arith.addf %134, %135 : vector<8x32xf32>
    %137 = arith.negf %136 : vector<8x32xf32>
    %138 = math.exp %137 : vector<8x32xf32>
    %cst_55 = arith.constant 1.000000e+00 : f32
    %139 = vector.broadcast %cst_55 : f32 to vector<8x32xf32>
    %140 = arith.addf %139, %138 : vector<8x32xf32>
    %141 = arith.divf %139, %140 : vector<8x32xf32>
    %142 = arith.subf %141, %116 : vector<8x32xf32>
    %143 = vector.broadcast %cst_19 : f32 to vector<8x32xf32>
    %144 = arith.mulf %143, %142 : vector<8x32xf32>
    %145 = arith.addf %116, %144 : vector<8x32xf32>
    %cst_56 = arith.constant dense<0.000000e+00> : vector<8x128xf32>
    %146 = tpu.matmul %145, %10, %cst_56 {dimension_numbers = #tpu.dot_dimension_numbers<[1], [0], [0], [1], [0, 0, 1, 1], [], []>} : vector<8x32xf32>, vector<32x128xf32>, vector<8x128xf32> -> vector<8x128xf32>
    %147 = arith.addf %146, %13 : vector<8x128xf32>
    %148 = arith.negf %147 : vector<8x128xf32>
    %149 = math.exp %148 : vector<8x128xf32>
    %cst_57 = arith.constant 1.000000e+00 : f32
    %150 = vector.broadcast %cst_57 : f32 to vector<8x128xf32>
    %151 = arith.addf %150, %149 : vector<8x128xf32>
    %152 = arith.divf %150, %151 : vector<8x128xf32>
    %153 = arith.subf %152, %127 : vector<8x128xf32>
    %154 = vector.broadcast %cst_19 : f32 to vector<8x128xf32>
    %155 = arith.mulf %154, %153 : vector<8x128xf32>
    %156 = arith.addf %127, %155 : vector<8x128xf32>
    %157 = arith.index_cast %c4_i32 : i32 to index
    %c0_58 = arith.constant 0 : index
    %c0_59 = arith.constant 0 : index
    %158 = vector.load %arg9[%157, %c0_58, %c0_59] : memref<8x8x128xf32, #tpu.memory_space<vmem>>, vector<1x8x128xf32>
    %159 = vector.shape_cast %158 : vector<1x8x128xf32> to vector<8x128xf32>
    %160 = vector.shape_cast %156 : vector<8x128xf32> to vector<1x8x128xf32>
    tpu.vector_store %arg9[%157, %c0_58, %c0_59], %160 {strides = array<i32>} : memref<8x8x128xf32, #tpu.memory_space<vmem>>, vector<1x8x128xf32>,
    %c5_i32 = arith.constant 5 : i32
    %161 = arith.index_cast %c5_i32 : i32 to index
    %c0_60 = arith.constant 0 : index
    %c0_61 = arith.constant 0 : index
    %162 = vector.load %arg12[%161, %c0_60, %c0_61] : memref<8x8x32xf32, #tpu.memory_space<vmem>>, vector<1x8x32xf32>
    %163 = vector.shape_cast %162 : vector<1x8x32xf32> to vector<8x32xf32>
    %cst_62 = arith.constant dense<0.000000e+00> : vector<8x32xf32>
    %164 = tpu.matmul %145, %9, %cst_62 {dimension_numbers = #tpu.dot_dimension_numbers<[1], [0], [0], [1], [0, 0, 1, 1], [], []>} : vector<8x32xf32>, vector<32x32xf32>, vector<8x32xf32> -> vector<8x32xf32>
    %165 = arith.addf %163, %164 : vector<8x32xf32>
    %166 = arith.negf %165 : vector<8x32xf32>
    %167 = math.exp %166 : vector<8x32xf32>
    %cst_63 = arith.constant 1.000000e+00 : f32
    %168 = vector.broadcast %cst_63 : f32 to vector<8x32xf32>
    %169 = arith.addf %168, %167 : vector<8x32xf32>
    %170 = arith.divf %168, %169 : vector<8x32xf32>
    %171 = arith.subf %170, %145 : vector<8x32xf32>
    %172 = vector.broadcast %cst_19 : f32 to vector<8x32xf32>
    %173 = arith.mulf %172, %171 : vector<8x32xf32>
    %174 = arith.addf %145, %173 : vector<8x32xf32>
    %cst_64 = arith.constant dense<0.000000e+00> : vector<8x128xf32>
    %175 = tpu.matmul %174, %10, %cst_64 {dimension_numbers = #tpu.dot_dimension_numbers<[1], [0], [0], [1], [0, 0, 1, 1], [], []>} : vector<8x32xf32>, vector<32x128xf32>, vector<8x128xf32> -> vector<8x128xf32>
    %176 = arith.addf %175, %13 : vector<8x128xf32>
    %177 = arith.negf %176 : vector<8x128xf32>
    %178 = math.exp %177 : vector<8x128xf32>
    %cst_65 = arith.constant 1.000000e+00 : f32
    %179 = vector.broadcast %cst_65 : f32 to vector<8x128xf32>
    %180 = arith.addf %179, %178 : vector<8x128xf32>
    %181 = arith.divf %179, %180 : vector<8x128xf32>
    %182 = arith.subf %181, %156 : vector<8x128xf32>
    %183 = vector.broadcast %cst_19 : f32 to vector<8x128xf32>
    %184 = arith.mulf %183, %182 : vector<8x128xf32>
    %185 = arith.addf %156, %184 : vector<8x128xf32>
    %186 = arith.index_cast %c5_i32 : i32 to index
    %c0_66 = arith.constant 0 : index
    %c0_67 = arith.constant 0 : index
    %187 = vector.load %arg9[%186, %c0_66, %c0_67] : memref<8x8x128xf32, #tpu.memory_space<vmem>>, vector<1x8x128xf32>
    %188 = vector.shape_cast %187 : vector<1x8x128xf32> to vector<8x128xf32>
    %189 = vector.shape_cast %185 : vector<8x128xf32> to vector<1x8x128xf32>
    tpu.vector_store %arg9[%186, %c0_66, %c0_67], %189 {strides = array<i32>} : memref<8x8x128xf32, #tpu.memory_space<vmem>>, vector<1x8x128xf32>,
    %c6_i32 = arith.constant 6 : i32
    %190 = arith.index_cast %c6_i32 : i32 to index
    %c0_68 = arith.constant 0 : index
    %c0_69 = arith.constant 0 : index
    %191 = vector.load %arg12[%190, %c0_68, %c0_69] : memref<8x8x32xf32, #tpu.memory_space<vmem>>, vector<1x8x32xf32>
    %192 = vector.shape_cast %191 : vector<1x8x32xf32> to vector<8x32xf32>
    %cst_70 = arith.constant dense<0.000000e+00> : vector<8x32xf32>
    %193 = tpu.matmul %174, %9, %cst_70 {dimension_numbers = #tpu.dot_dimension_numbers<[1], [0], [0], [1], [0, 0, 1, 1], [], []>} : vector<8x32xf32>, vector<32x32xf32>, vector<8x32xf32> -> vector<8x32xf32>
    %194 = arith.addf %192, %193 : vector<8x32xf32>
    %195 = arith.negf %194 : vector<8x32xf32>
    %196 = math.exp %195 : vector<8x32xf32>
    %cst_71 = arith.constant 1.000000e+00 : f32
    %197 = vector.broadcast %cst_71 : f32 to vector<8x32xf32>
    %198 = arith.addf %197, %196 : vector<8x32xf32>
    %199 = arith.divf %197, %198 : vector<8x32xf32>
    %200 = arith.subf %199, %174 : vector<8x32xf32>
    %201 = vector.broadcast %cst_19 : f32 to vector<8x32xf32>
    %202 = arith.mulf %201, %200 : vector<8x32xf32>
    %203 = arith.addf %174, %202 : vector<8x32xf32>
    %cst_72 = arith.constant dense<0.000000e+00> : vector<8x128xf32>
    %204 = tpu.matmul %203, %10, %cst_72 {dimension_numbers = #tpu.dot_dimension_numbers<[1], [0], [0], [1], [0, 0, 1, 1], [], []>} : vector<8x32xf32>, vector<32x128xf32>, vector<8x128xf32> -> vector<8x128xf32>
    %205 = arith.addf %204, %13 : vector<8x128xf32>
    %206 = arith.negf %205 : vector<8x128xf32>
    %207 = math.exp %206 : vector<8x128xf32>
    %cst_73 = arith.constant 1.000000e+00 : f32
    %208 = vector.broadcast %cst_73 : f32 to vector<8x128xf32>
    %209 = arith.addf %208, %207 : vector<8x128xf32>
    %210 = arith.divf %208, %209 : vector<8x128xf32>
    %211 = arith.subf %210, %185 : vector<8x128xf32>
    %212 = vector.broadcast %cst_19 : f32 to vector<8x128xf32>
    %213 = arith.mulf %212, %211 : vector<8x128xf32>
    %214 = arith.addf %185, %213 : vector<8x128xf32>
    %215 = arith.index_cast %c6_i32 : i32 to index
    %c0_74 = arith.constant 0 : index
    %c0_75 = arith.constant 0 : index
    %216 = vector.load %arg9[%215, %c0_74, %c0_75] : memref<8x8x128xf32, #tpu.memory_space<vmem>>, vector<1x8x128xf32>
    %217 = vector.shape_cast %216 : vector<1x8x128xf32> to vector<8x128xf32>
    %218 = vector.shape_cast %214 : vector<8x128xf32> to vector<1x8x128xf32>
    tpu.vector_store %arg9[%215, %c0_74, %c0_75], %218 {strides = array<i32>} : memref<8x8x128xf32, #tpu.memory_space<vmem>>, vector<1x8x128xf32>,
    %c7_i32 = arith.constant 7 : i32
    %219 = arith.index_cast %c7_i32 : i32 to index
    %c0_76 = arith.constant 0 : index
    %c0_77 = arith.constant 0 : index
    %220 = vector.load %arg12[%219, %c0_76, %c0_77] : memref<8x8x32xf32, #tpu.memory_space<vmem>>, vector<1x8x32xf32>
    %221 = vector.shape_cast %220 : vector<1x8x32xf32> to vector<8x32xf32>
    %cst_78 = arith.constant dense<0.000000e+00> : vector<8x32xf32>
    %222 = tpu.matmul %203, %9, %cst_78 {dimension_numbers = #tpu.dot_dimension_numbers<[1], [0], [0], [1], [0, 0, 1, 1], [], []>} : vector<8x32xf32>, vector<32x32xf32>, vector<8x32xf32> -> vector<8x32xf32>
    %223 = arith.addf %221, %222 : vector<8x32xf32>
    %224 = arith.negf %223 : vector<8x32xf32>
    %225 = math.exp %224 : vector<8x32xf32>
    %cst_79 = arith.constant 1.000000e+00 : f32
    %226 = vector.broadcast %cst_79 : f32 to vector<8x32xf32>
    %227 = arith.addf %226, %225 : vector<8x32xf32>
    %228 = arith.divf %226, %227 : vector<8x32xf32>
    %229 = arith.subf %228, %203 : vector<8x32xf32>
    %230 = vector.broadcast %cst_19 : f32 to vector<8x32xf32>
    %231 = arith.mulf %230, %229 : vector<8x32xf32>
    %232 = arith.addf %203, %231 : vector<8x32xf32>
    %cst_80 = arith.constant dense<0.000000e+00> : vector<8x128xf32>
    %233 = tpu.matmul %232, %10, %cst_80 {dimension_numbers = #tpu.dot_dimension_numbers<[1], [0], [0], [1], [0, 0, 1, 1], [], []>} : vector<8x32xf32>, vector<32x128xf32>, vector<8x128xf32> -> vector<8x128xf32>
    %234 = arith.addf %233, %13 : vector<8x128xf32>
    %235 = arith.negf %234 : vector<8x128xf32>
    %236 = math.exp %235 : vector<8x128xf32>
    %cst_81 = arith.constant 1.000000e+00 : f32
    %237 = vector.broadcast %cst_81 : f32 to vector<8x128xf32>
    %238 = arith.addf %237, %236 : vector<8x128xf32>
    %239 = arith.divf %237, %238 : vector<8x128xf32>
    %240 = arith.subf %239, %214 : vector<8x128xf32>
    %241 = vector.broadcast %cst_19 : f32 to vector<8x128xf32>
    %242 = arith.mulf %241, %240 : vector<8x128xf32>
    %243 = arith.addf %214, %242 : vector<8x128xf32>
    %244 = arith.index_cast %c7_i32 : i32 to index
    %c0_82 = arith.constant 0 : index
    %c0_83 = arith.constant 0 : index
    %245 = vector.load %arg9[%244, %c0_82, %c0_83] : memref<8x8x128xf32, #tpu.memory_space<vmem>>, vector<1x8x128xf32>
    %246 = vector.shape_cast %245 : vector<1x8x128xf32> to vector<8x128xf32>
    %247 = vector.shape_cast %243 : vector<8x128xf32> to vector<1x8x128xf32>
    tpu.vector_store %arg9[%244, %c0_82, %c0_83], %247 {strides = array<i32>} : memref<8x8x128xf32, #tpu.memory_space<vmem>>, vector<1x8x128xf32>,
    %c8_i32 = arith.constant 8 : i32
    %c0_84 = arith.constant 0 : index
    %c0_85 = arith.constant 0 : index
    %248 = vector.load %arg10[%c0_84, %c0_85] : memref<8x32xf32, #tpu.memory_space<vmem>>, vector<8x32xf32>
    tpu.vector_store %arg10[%c0_84, %c0_85], %232 {strides = array<i32>} : memref<8x32xf32, #tpu.memory_space<vmem>>, vector<8x32xf32>,
    %c0_86 = arith.constant 0 : index
    %c0_87 = arith.constant 0 : index
    %249 = vector.load %arg11[%c0_86, %c0_87] : memref<8x128xf32, #tpu.memory_space<vmem>>, vector<8x128xf32>
    tpu.vector_store %arg11[%c0_86, %c0_87], %243 {strides = array<i32>} : memref<8x128xf32, #tpu.memory_space<vmem>>, vector<8x128xf32>,
    return
  }
  func.func @transform_0(%arg0: i32) -> (i32, i32, i32) {
    %c0_i32 = arith.constant 0 : i32
    %c0_i32_0 = arith.constant 0 : i32
    %c0_i32_1 = arith.constant 0 : i32
    return %c0_i32, %arg0, %c0_i32_0 : i32, i32, i32
  }
  func.func @transform_1(%arg0: i32) -> (i32, i32) {
    %c0_i32 = arith.constant 0 : i32
    %c0_i32_0 = arith.constant 0 : i32
    %c0_i32_1 = arith.constant 0 : i32
    return %c0_i32, %c0_i32_0 : i32, i32
  }
  func.func @transform_2(%arg0: i32) -> (i32, i32) {
    %c0_i32 = arith.constant 0 : i32
    %c0_i32_0 = arith.constant 0 : i32
    %c0_i32_1 = arith.constant 0 : i32
    return %c0_i32, %c0_i32_0 : i32, i32
  }
  func.func @transform_3(%arg0: i32) -> (i32, i32) {
    %c0_i32 = arith.constant 0 : i32
    %c0_i32_0 = arith.constant 0 : i32
    %c0_i32_1 = arith.constant 0 : i32
    return %c0_i32, %c0_i32_0 : i32, i32
  }
  func.func @transform_4(%arg0: i32) -> (i32, i32) {
    %c0_i32 = arith.constant 0 : i32
    %c0_i32_0 = arith.constant 0 : i32
    %c0_i32_1 = arith.constant 0 : i32
    return %c0_i32, %c0_i32_0 : i32, i32
  }
  func.func @transform_5(%arg0: i32) -> (i32, i32) {
    %c0_i32 = arith.constant 0 : i32
    %c0_i32_0 = arith.constant 0 : i32
    %c0_i32_1 = arith.constant 0 : i32
    return %c0_i32, %c0_i32_0 : i32, i32
  }
  func.func @transform_6(%arg0: i32) -> (i32, i32) {
    %c0_i32 = arith.constant 0 : i32
    %c0_i32_0 = arith.constant 0 : i32
    return %arg0, %c0_i32 : i32, i32
  }
  func.func @transform_7(%arg0: i32) -> (i32, i32) {
    %c0_i32 = arith.constant 0 : i32
    %c0_i32_0 = arith.constant 0 : i32
    return %arg0, %c0_i32 : i32, i32
  }
  func.func @transform_8(%arg0: i32) -> (i32, i32, i32) {
    %c0_i32 = arith.constant 0 : i32
    %c0_i32_0 = arith.constant 0 : i32
    %c0_i32_1 = arith.constant 0 : i32
    return %c0_i32, %arg0, %c0_i32_0 : i32, i32, i32
  }
  func.func @transform_9(%arg0: i32) -> (i32, i32) {
    %c0_i32 = arith.constant 0 : i32
    %c0_i32_0 = arith.constant 0 : i32
    return %arg0, %c0_i32 : i32, i32
  }
  func.func @transform_10(%arg0: i32) -> (i32, i32) {
    %c0_i32 = arith.constant 0 : i32
    %c0_i32_0 = arith.constant 0 : i32
    return %arg0, %c0_i32 : i32, i32
  }
}

</mosaic_0001>

<llo_original>
// kernel: tpu_custom_call.1
$region0: #{tpu_custom_call.1}
  #allocation0 [shape = 'u32[]', space=smem, size = 0x4, offset = 0x4, fixed_abs, tag = 'smem constant byte address 0x4 - core index']
  #allocation1 [shape = 'u32[72,128]{1,0:T(1,128)}', space=vmem, size = 0x9000, scoped, tag = 'internal scratch']
  #allocation2 [shape = 'f32[8,8,32]{2,1,0:T(8,128)}', space=vmem, size = 0x8000, scoped, tag = 'scratch operand']
  %s0 = inlined_call_operand.hbm [shape: f32[8,16,16], index: 0, kind: input, shape index: {}]
  %s1 = inlined_call_operand.hbm [shape: f32[16,32], index: 1, kind: input, shape index: {}]
  %s2 = inlined_call_operand.hbm [shape: f32[32,32], index: 2, kind: input, shape index: {}]
  %s3 = inlined_call_operand.vmem [shape: f32[1,32], index: 3, kind: input, shape index: {}]
  %s4 = inlined_call_operand.hbm [shape: f32[32,128], index: 4, kind: input, shape index: {}]
  %s5 = inlined_call_operand.vmem [shape: f32[1,128], index: 5, kind: input, shape index: {}]
  %s6 = inlined_call_operand.hbm [shape: f32[16,32], index: 6, kind: input, shape index: {}]
  %s7 = inlined_call_operand.hbm [shape: f32[16,128], index: 7, kind: input, shape index: {}]
  %s8 = inlined_call_operand.hbm [shape: f32[8,16,128], index: 8, kind: output, shape index: {0}]
  %s9 = inlined_call_operand.hbm [shape: f32[16,32], index: 9, kind: output, shape index: {1}]
  %s10 = inlined_call_operand.hbm [shape: f32[16,128], index: 10, kind: output, shape index: {2}]
  %11 = xla_tuple %s8, %s9, %s10
  %s12 = sld [smem:[#allocation0]]
  $region105: #{tpu_custom_call.1} parent=0
    _
  %s14 = ssub.s32 1, %s12
  %s15 = scalar_select 0, %s14, %s12
  $region1: #{tpu_custom_call.1} parent=0
    #allocation3 [shape = 'u8[65536]{0}', space=vmem, size = 0x10000, scoped, tag = 'input window, operand 0']
    #allocation4 [shape = 's32[2]{0}', space=sflag, size = 0x8, scoped, tag = 'scoped memory for tpu_custom_call.1']
    #allocation5 [shape = 's32[2]{0}', space=sflag, size = 0x8, scoped, tag = 'scoped memory for tpu_custom_call.1']
    #allocation6 [shape = 'u8[8192]{0}', space=vmem, size = 0x2000, scoped, tag = 'input window, operand 1, single buffered']
    #allocation7 [shape = 's32[1]{0}', space=sflag, size = 0x4, scoped, tag = 'scoped memory for tpu_custom_call.1']
    #allocation8 [shape = 'u8[16384]{0}', space=vmem, size = 0x4000, scoped, tag = 'input window, operand 2, single buffered']
    #allocation9 [shape = 'u8[16384]{0}', space=vmem, size = 0x4000, scoped, tag = 'input window, operand 4, single buffered']
    #allocation10 [shape = 's32[1]{0}', space=sflag, size = 0x4, scoped, tag = 'scoped memory for tpu_custom_call.1']
    #allocation11 [shape = 'u8[8192]{0}', space=vmem, size = 0x2000, scoped, tag = 'input window, operand 6']
    #allocation12 [shape = 'u8[8192]{0}', space=vmem, size = 0x2000, scoped, tag = 'input window, operand 7']
    #allocation13 [shape = 'u8[65536]{0}', space=vmem, size = 0x10000, scoped, tag = 'output window, operand 0']
    #allocation14 [shape = 'u8[8192]{0}', space=vmem, size = 0x2000, scoped, tag = 'output window, operand 1']
    #allocation15 [shape = 's32[2]{0}', space=sflag, size = 0x8, scoped, tag = 'scoped memory for tpu_custom_call.1']
    #allocation16 [shape = 'u8[8192]{0}', space=vmem, size = 0x2000, scoped, tag = 'output window, operand 2']
    %16 = vsyncpa [#allocation4], 0
    %s17 = scalar_lea.sflag [#allocation4], 1
    %18 = vsyncpa %s17, 0
    %19 = vsyncpa [#allocation7], 0
    %20 = vsyncpa [#allocation10], 0
    %21 = vsyncpa [#allocation5], 0
    %s22 = scalar_lea.sflag [#allocation5], 1
    %23 = vsyncpa %s22, 0
    %24 = vsyncpa [#allocation15], 0
    %s25 = scalar_lea.sflag [#allocation15], 1
    %26 = vsyncpa %s25, 0
    loop: start=0, step=1, limit=4
    $region2: #{tpu_custom_call.1} parent=1 // loop_pre_header
      _
    $region3: #{tpu_custom_call.1} parent=1 // loop_header
      %s28 = sphi 0, %s32
      %p29 = scmp.ge.s32.totalorder %s28, 4
      %s38 = sphi 0, %s40
      %s41 = sphi 0, %s38
      %s42 = sphi 0, %s41
      %s58 = sphi 0, %s42
      %s62 = sphi 0, %s62
      %s64 = sphi 0, %s62
      %s65 = sphi 0, %s64
      %s79 = sphi 0, %s65
      %s83 = sphi 0, %s83
      %s85 = sphi 0, %s83
      %s86 = sphi 0, %s85
      %s100 = sphi 0, %s86
      %s104 = sphi 0, %s104
      %s106 = sphi 0, %s104
      %s107 = sphi 0, %s106
      %s121 = sphi 0, %s107
      %s125 = sphi 0, %s125
      %s127 = sphi 0, %s125
      %s128 = sphi 0, %s127
      %s142 = sphi 0, %s128
      %s146 = sphi 0, %s146
      %s148 = sphi 0, %s146
      %s149 = sphi 0, %s148
      %s163 = sphi 0, %s149
      %s169 = sphi 0, %s171
      %s172 = sphi 0, %s169
      %s173 = sphi 0, %s172
      %s189 = sphi 0, %s173
      %s195 = sphi 0, %s197
      %s198 = sphi 0, %s195
      %s199 = sphi 0, %s198
      %s215 = sphi 0, %s199
      %s221 = sphi 0, %s223
      %s224 = sphi 0, %s221
      %s225 = sphi 0, %s224
      %s241 = sphi 0, %s225
      %s247 = sphi 0, %s249
      %s250 = sphi 0, %s247
      %s251 = sphi 0, %s250
      %s267 = sphi 0, %s251
      %s273 = sphi 0, %s275
      %s276 = sphi 0, %s273
      %s277 = sphi 0, %s276
      %s293 = sphi 0, %s277
    $region4: #{tpu_custom_call.1} parent=1 // loop_header_branch
      %31 = sbr.rel (%p29) target = $region8
    $region5: #{tpu_custom_call.1} parent=1 // loop_body
      %s33 = ssub.s32 %s28, 1
      %s34 = ssub.s32 %s28, 2
      %s35 = sadd.s32 %s28, 1
      %s36 = ssub.s32 %s28, %s35
      %p37 = scmp.eq.s32.totalorder %s36, 0
      %s39 = sadd.s32 %s38, 1
      %s40 = scalar_select %p37, %s38, %s39
      %p43 = pneg %p37
      %p44 = scmp.eq.s32.totalorder %s28, 1
      %p45 = por %p43, %p44
      %p46 = scmp.ne.s32.totalorder %s38, %s41
      %p47 = scmp.eq.s32.totalorder %s28, 0
      %p48 = por %p46, %p47
      %p49 = scmp.ne.s32.totalorder %s38, %s41
      %p50 = scmp.eq.s32.totalorder %s33, 1
      %p51 = por %p49, %p50
      %p52 = scmp.ne.s32.totalorder %s41, %s42
      %p53 = scmp.eq.s32.totalorder %s33, 0
      %p54 = por %p52, %p53
      %p55 = scmp.ne.s32.totalorder %s41, %s42
      %p56 = scmp.eq.s32.totalorder %s34, 1
      %p57 = por %p55, %p56
      %p59 = scmp.ne.s32.totalorder %s42, %s58
      %p60 = scmp.eq.s32.totalorder %s34, 0
      %p61 = por %p59, %p60
      %s63 = sadd.s32 %s62, 1
      %p66 = scmp.eq.s32.totalorder %s28, 1
      %p67 = scmp.ne.s32.totalorder %s62, %s64
      %p68 = scmp.eq.s32.totalorder %s28, 0
      %p69 = por %p67, %p68
      %p70 = scmp.ne.s32.totalorder %s62, %s64
      %p71 = scmp.eq.s32.totalorder %s33, 1
      %p72 = por %p70, %p71
      %p73 = scmp.ne.s32.totalorder %s64, %s65
      %p74 = scmp.eq.s32.totalorder %s33, 0
      %p75 = por %p73, %p74
      %p76 = scmp.ne.s32.totalorder %s64, %s65
      %p77 = scmp.eq.s32.totalorder %s34, 1
      %p78 = por %p76, %p77
      %p80 = scmp.ne.s32.totalorder %s65, %s79
      %p81 = scmp.eq.s32.totalorder %s34, 0
      %p82 = por %p80, %p81
      %s84 = sadd.s32 %s83, 1
      %p87 = scmp.eq.s32.totalorder %s28, 1
      %p88 = scmp.ne.s32.totalorder %s83, %s85
      %p89 = scmp.eq.s32.totalorder %s28, 0
      %p90 = por %p88, %p89
      %p91 = scmp.ne.s32.totalorder %s83, %s85
      %p92 = scmp.eq.s32.totalorder %s33, 1
      %p93 = por %p91, %p92
      %p94 = scmp.ne.s32.totalorder %s85, %s86
      %p95 = scmp.eq.s32.totalorder %s33, 0
      %p96 = por %p94, %p95
      %p97 = scmp.ne.s32.totalorder %s85, %s86
      %p98 = scmp.eq.s32.totalorder %s34, 1
      %p99 = por %p97, %p98
      %p101 = scmp.ne.s32.totalorder %s86, %s100
      %p102 = scmp.eq.s32.totalorder %s34, 0
      %p103 = por %p101, %p102
      %s105 = sadd.s32 %s104, 1
      %p108 = scmp.eq.s32.totalorder %s28, 1
      %p109 = scmp.ne.s32.totalorder %s104, %s106
      %p110 = scmp.eq.s32.totalorder %s28, 0
      %p111 = por %p109, %p110
      %p112 = scmp.ne.s32.totalorder %s104, %s106
      %p113 = scmp.eq.s32.totalorder %s33, 1
      %p114 = por %p112, %p113
      %p115 = scmp.ne.s32.totalorder %s106, %s107
      %p116 = scmp.eq.s32.totalorder %s33, 0
      %p117 = por %p115, %p116
      %p118 = scmp.ne.s32.totalorder %s106, %s107
      %p119 = scmp.eq.s32.totalorder %s34, 1
      %p120 = por %p118, %p119
      %p122 = scmp.ne.s32.totalorder %s107, %s121
      %p123 = scmp.eq.s32.totalorder %s34, 0
      %p124 = por %p122, %p123
      %s126 = sadd.s32 %s125, 1
      %p129 = scmp.eq.s32.totalorder %s28, 1
      %p130 = scmp.ne.s32.totalorder %s125, %s127
      %p131 = scmp.eq.s32.totalorder %s28, 0
      %p132 = por %p130, %p131
      %p133 = scmp.ne.s32.totalorder %s125, %s127
      %p134 = scmp.eq.s32.totalorder %s33, 1
      %p135 = por %p133, %p134
      %p136 = scmp.ne.s32.totalorder %s127, %s128
      %p137 = scmp.eq.s32.totalorder %s33, 0
      %p138 = por %p136, %p137
      %p139 = scmp.ne.s32.totalorder %s127, %s128
      %p140 = scmp.eq.s32.totalorder %s34, 1
      %p141 = por %p139, %p140
      %p143 = scmp.ne.s32.totalorder %s128, %s142
      %p144 = scmp.eq.s32.totalorder %s34, 0
      %p145 = por %p143, %p144
      %s147 = sadd.s32 %s146, 1
      %p150 = scmp.eq.s32.totalorder %s28, 1
      %p151 = scmp.ne.s32.totalorder %s146, %s148
      %p152 = scmp.eq.s32.totalorder %s28, 0
      %p153 = por %p151, %p152
      %p154 = scmp.ne.s32.totalorder %s146, %s148
      %p155 = scmp.eq.s32.totalorder %s33, 1
      %p156 = por %p154, %p155
      %p157 = scmp.ne.s32.totalorder %s148, %s149
      %p158 = scmp.eq.s32.totalorder %s33, 0
      %p159 = por %p157, %p158
      %p160 = scmp.ne.s32.totalorder %s148, %s149
      %p161 = scmp.eq.s32.totalorder %s34, 1
      %p162 = por %p160, %p161
      %p164 = scmp.ne.s32.totalorder %s149, %s163
      %p165 = scmp.eq.s32.totalorder %s34, 0
      %p166 = por %p164, %p165
      %s167 = ssub.s32 %s28, %s35
      %p168 = scmp.eq.s32.totalorder %s167, 0
      %s170 = sadd.s32 %s169, 1
      %s171 = scalar_select %p168, %s169, %s170
      %p174 = pneg %p168
      %p175 = scmp.eq.s32.totalorder %s28, 1
      %p176 = por %p174, %p175
      %p177 = scmp.ne.s32.totalorder %s169, %s172
      %p178 = scmp.eq.s32.totalorder %s28, 0
      %p179 = por %p177, %p178
      %p180 = scmp.ne.s32.totalorder %s169, %s172
      %p181 = scmp.eq.s32.totalorder %s33, 1
      %p182 = por %p180, %p181
      %p183 = scmp.ne.s32.totalorder %s172, %s173
      %p184 = scmp.eq.s32.totalorder %s33, 0
      %p185 = por %p183, %p184
      %p186 = scmp.ne.s32.totalorder %s172, %s173
      %p187 = scmp.eq.s32.totalorder %s34, 1
      %p188 = por %p186, %p187
      %p190 = scmp.ne.s32.totalorder %s173, %s189
      %p191 = scmp.eq.s32.totalorder %s34, 0
      %p192 = por %p190, %p191
      %s193 = ssub.s32 %s28, %s35
      %p194 = scmp.eq.s32.totalorder %s193, 0
      %s196 = sadd.s32 %s195, 1
      %s197 = scalar_select %p194, %s195, %s196
      %p200 = pneg %p194
      %p201 = scmp.eq.s32.totalorder %s28, 1
      %p202 = por %p200, %p201
      %p203 = scmp.ne.s32.totalorder %s195, %s198
      %p204 = scmp.eq.s32.totalorder %s28, 0
      %p205 = por %p203, %p204
      %p206 = scmp.ne.s32.totalorder %s195, %s198
      %p207 = scmp.eq.s32.totalorder %s33, 1
      %p208 = por %p206, %p207
      %p209 = scmp.ne.s32.totalorder %s198, %s199
      %p210 = scmp.eq.s32.totalorder %s33, 0
      %p211 = por %p209, %p210
      %p212 = scmp.ne.s32.totalorder %s198, %s199
      %p213 = scmp.eq.s32.totalorder %s34, 1
      %p214 = por %p212, %p213
      %p216 = scmp.ne.s32.totalorder %s199, %s215
      %p217 = scmp.eq.s32.totalorder %s34, 0
      %p218 = por %p216, %p217
      %s219 = ssub.s32 %s28, %s35
      %p220 = scmp.eq.s32.totalorder %s219, 0
      %s222 = sadd.s32 %s221, 1
      %s223 = scalar_select %p220, %s221, %s222
      %p226 = pneg %p220
      %p227 = scmp.eq.s32.totalorder %s28, 1
      %p228 = por %p226, %p227
      %p229 = scmp.ne.s32.totalorder %s221, %s224
      %p230 = scmp.eq.s32.totalorder %s28, 0
      %p231 = por %p229, %p230
      %p232 = scmp.ne.s32.totalorder %s221, %s224
      %p233 = scmp.eq.s32.totalorder %s33, 1
      %p234 = por %p232, %p233
      %p235 = scmp.ne.s32.totalorder %s224, %s225
      %p236 = scmp.eq.s32.totalorder %s33, 0
      %p237 = por %p235, %p236
      %p238 = scmp.ne.s32.totalorder %s224, %s225
      %p239 = scmp.eq.s32.totalorder %s34, 1
      %p240 = por %p238, %p239
      %p242 = scmp.ne.s32.totalorder %s225, %s241
      %p243 = scmp.eq.s32.totalorder %s34, 0
      %p244 = por %p242, %p243
      %s245 = ssub.s32 %s28, %s35
      %p246 = scmp.eq.s32.totalorder %s245, 0
      %s248 = sadd.s32 %s247, 1
      %s249 = scalar_select %p246, %s247, %s248
      %p252 = pneg %p246
      %p253 = scmp.eq.s32.totalorder %s28, 1
      %p254 = por %p252, %p253
      %p255 = scmp.ne.s32.totalorder %s247, %s250
      %p256 = scmp.eq.s32.totalorder %s28, 0
      %p257 = por %p255, %p256
      %p258 = scmp.ne.s32.totalorder %s247, %s250
      %p259 = scmp.eq.s32.totalorder %s33, 1
      %p260 = por %p258, %p259
      %p261 = scmp.ne.s32.totalorder %s250, %s251
      %p262 = scmp.eq.s32.totalorder %s33, 0
      %p263 = por %p261, %p262
      %p264 = scmp.ne.s32.totalorder %s250, %s251
      %p265 = scmp.eq.s32.totalorder %s34, 1
      %p266 = por %p264, %p265
      %p268 = scmp.ne.s32.totalorder %s251, %s267
      %p269 = scmp.eq.s32.totalorder %s34, 0
      %p270 = por %p268, %p269
      %s271 = ssub.s32 %s28, %s35
      %p272 = scmp.eq.s32.totalorder %s271, 0
      %s274 = sadd.s32 %s273, 1
      %s275 = scalar_select %p272, %s273, %s274
      %p278 = pneg %p272
      %p279 = scmp.eq.s32.totalorder %s28, 1
      %p280 = por %p278, %p279
      %p281 = scmp.ne.s32.totalorder %s273, %s276
      %p282 = scmp.eq.s32.totalorder %s28, 0
      %p283 = por %p281, %p282
      %p284 = scmp.ne.s32.totalorder %s273, %s276
      %p285 = scmp.eq.s32.totalorder %s33, 1
      %p286 = por %p284, %p285
      %p287 = scmp.ne.s32.totalorder %s276, %s277
      %p288 = scmp.eq.s32.totalorder %s33, 0
      %p289 = por %p287, %p288
      %p290 = scmp.ne.s32.totalorder %s276, %s277
      %p291 = scmp.eq.s32.totalorder %s34, 1
      %p292 = por %p290, %p291
      %p294 = scmp.ne.s32.totalorder %s277, %s293
      %p295 = scmp.eq.s32.totalorder %s34, 0
      %p296 = por %p294, %p295
      %p297 = scmp.le.s32.totalorder 1, %s28
      %p298 = scmp.lt.s32.totalorder %s28, 3
      %p299 = pnand %p297, %p298
      %p300 = pneg %p299
      // Predicated region
      $region9: #{tpu_custom_call.1} parent=5 // pred_check
        _
      $region10: #{tpu_custom_call.1} parent=5 // pred_check_branch
        %302 = sbr.rel (%p299) target = $region12
      $region11: #{tpu_custom_call.1} parent=5 // pred_region
        %s303 = ssub.s32 %s28, 1
        // Predicated region
        $region13: #{tpu_custom_call.1} parent=11 // pred_check
          %p304 = pneg %p75
        $region14: #{tpu_custom_call.1} parent=11 // pred_check_branch
          %306 = sbr.rel (%p304) target = $region16
        $region15: #{tpu_custom_call.1} parent=11 // pred_region
          %308 = vsyncadd [#allocation7], 0
          %s309 = sshll.u32 %s1, 4
          %s310 = int_to_ptr.hbm [resolvable:$true] %s309
          %s311 = sshll.u32 [#allocation6], 4
          %s312 = int_to_ptr.vmem [resolvable:$true] %s311
          %317 = dma.hbm_to_vmem [thread:$0]  %s310, 256, %s312, [#allocation7], 128, 128, 8
        $region16: #{tpu_custom_call.1} parent=11 // pred_fallthru
          _
        // Predicated region
        $region17: #{tpu_custom_call.1} parent=11 // pred_check
          %p318 = pneg %p96
        $region18: #{tpu_custom_call.1} parent=11 // pred_check_branch
          %320 = sbr.rel (%p318) target = $region20
        $region19: #{tpu_custom_call.1} parent=11 // pred_region
          %322 = vsyncadd [#allocation7], 0
          %s323 = sshll.u32 %s2, 4
          %s324 = int_to_ptr.hbm [resolvable:$true] %s323
          %s325 = sshll.u32 [#allocation8], 4
          %s326 = int_to_ptr.vmem [resolvable:$true] %s325
          %331 = dma.hbm_to_vmem [thread:$0]  %s324, 512, %s326, [#allocation7], 128, 128, 8
        $region20: #{tpu_custom_call.1} parent=11 // pred_fallthru
          _
        // Predicated region
        $region21: #{tpu_custom_call.1} parent=11 // pred_check
          %p332 = pneg %p117
        $region22: #{tpu_custom_call.1} parent=11 // pred_check_branch
          %334 = sbr.rel (%p332) target = $region24
        $region23: #{tpu_custom_call.1} parent=11 // pred_region
          _
        $region24: #{tpu_custom_call.1} parent=11 // pred_fallthru
          _
        // Predicated region
        $region25: #{tpu_custom_call.1} parent=11 // pred_check
          %p335 = pneg %p138
        $region26: #{tpu_custom_call.1} parent=11 // pred_check_branch
          %337 = sbr.rel (%p335) target = $region28
        $region27: #{tpu_custom_call.1} parent=11 // pred_region
          %339 = vsyncadd [#allocation10], 0
          %s340 = sshll.u32 %s4, 4
          %s341 = int_to_ptr.hbm [resolvable:$true] %s340
          %s342 = sshll.u32 [#allocation9], 4
          %s343 = int_to_ptr.vmem [resolvable:$true] %s342
          %348 = dma.hbm_to_vmem [thread:$0]  %s341, 512, %s343, [#allocation10], 128, 128, 8
        $region28: #{tpu_custom_call.1} parent=11 // pred_fallthru
          _
        // Predicated region
        $region29: #{tpu_custom_call.1} parent=11 // pred_check
          %p349 = pneg %p159
        $region30: #{tpu_custom_call.1} parent=11 // pred_check_branch
          %351 = sbr.rel (%p349) target = $region32
        $region31: #{tpu_custom_call.1} parent=11 // pred_region
          _
        $region32: #{tpu_custom_call.1} parent=11 // pred_fallthru
          _
      $region12: #{tpu_custom_call.1} parent=5 // pred_fallthru
        _
      %p352 = scmp.lt.s32.totalorder %s28, 2
      // Predicated region
      $region33: #{tpu_custom_call.1} parent=5 // pred_check
        %p353 = pneg %p352
      $region34: #{tpu_custom_call.1} parent=5 // pred_check_branch
        %355 = sbr.rel (%p353) target = $region36
      $region35: #{tpu_custom_call.1} parent=5 // pred_region
        // Predicated region
        $region37: #{tpu_custom_call.1} parent=35 // pred_check
          %p356 = pneg %p48
        $region38: #{tpu_custom_call.1} parent=35 // pred_check_branch
          %358 = sbr.rel (%p356) target = $region40
        $region39: #{tpu_custom_call.1} parent=35 // pred_region
          %s359 = sand.u32 %s28, 1
          %s360 = scalar_lea.sflag [#allocation4], %s359
          %s361 = sand.u32 %s38, 1
          %s362 = smul.addr %s361, 64
          %s363 = scalar_lea.vmem [#allocation3], %s362
          %365 = vsyncadd %s360, 0
          %s366 = smul.addr %s28, 8
          %s367 = scalar_lea.hbm %s0, %s366
          %s368 = sshll.u32 %s367, 4
          %s369 = int_to_ptr.hbm [resolvable:$true] %s368
          %s370 = sshll.u32 %s363, 4
          %s371 = int_to_ptr.vmem [resolvable:$true] %s370
          %376 = dma.hbm_to_vmem [thread:$0]  %s369, 1024, %s371, %s360, 256, 128, 8
        $region40: #{tpu_custom_call.1} parent=35 // pred_fallthru
          _
        // Predicated region
        $region41: #{tpu_custom_call.1} parent=35 // pred_check
          %p377 = pneg %p179
        $region42: #{tpu_custom_call.1} parent=35 // pred_check_branch
          %379 = sbr.rel (%p377) target = $region44
        $region43: #{tpu_custom_call.1} parent=35 // pred_region
          %s380 = sand.u32 %s28, 1
          %s381 = scalar_lea.sflag [#allocation4], %s380
          %s382 = sand.u32 %s169, 1
          %s383 = smul.addr %s382, 8
          %s384 = scalar_lea.vmem [#allocation11], %s383
          %386 = vsyncadd %s381, 0
          %s387 = smul.addr %s28, 8
          %s388 = scalar_lea.hbm %s6, %s387
          %s390 = sshll.u32 %s388, 4
          %s391 = int_to_ptr.hbm [resolvable:$true] %s390
          %s392 = sshll.u32 %s384, 4
          %s393 = int_to_ptr.vmem [resolvable:$true] %s392
          %395 = dma.hbm_to_vmem [thread:$0]  %s391, 128, %s393, %s381
        $region44: #{tpu_custom_call.1} parent=35 // pred_fallthru
          _
        // Predicated region
        $region45: #{tpu_custom_call.1} parent=35 // pred_check
          %p396 = pneg %p205
        $region46: #{tpu_custom_call.1} parent=35 // pred_check_branch
          %398 = sbr.rel (%p396) target = $region48
        $region47: #{tpu_custom_call.1} parent=35 // pred_region
          %s399 = sand.u32 %s28, 1
          %s400 = scalar_lea.sflag [#allocation4], %s399
          %s401 = sand.u32 %s195, 1
          %s402 = smul.addr %s401, 8
          %s403 = scalar_lea.vmem [#allocation12], %s402
          %405 = vsyncadd %s400, 0
          %s406 = smul.addr %s28, 8
          %s407 = scalar_lea.hbm %s7, %s406
          %s409 = sshll.u32 %s407, 4
          %s410 = int_to_ptr.hbm [resolvable:$true] %s409
          %s411 = sshll.u32 %s403, 4
          %s412 = int_to_ptr.vmem [resolvable:$true] %s411
          %414 = dma.hbm_to_vmem [thread:$0]  %s410, 128, %s412, %s400
        $region48: #{tpu_custom_call.1} parent=35 // pred_fallthru
          _
      $region36: #{tpu_custom_call.1} parent=5 // pred_fallthru
        _
      %p415 = scmp.le.s32.totalorder 1, %s28
      %p416 = scmp.lt.s32.totalorder %s28, 3
      %p417 = pnand %p415, %p416
      %p418 = pneg %p417
      // Predicated region
      $region49: #{tpu_custom_call.1} parent=5 // pred_check
        _
      $region50: #{tpu_custom_call.1} parent=5 // pred_check_branch
        %420 = sbr.rel (%p417) target = $region52
      $region51: #{tpu_custom_call.1} parent=5 // pred_region
        %s421 = ssub.s32 %s28, 1
        %s422 = sand.u32 %s33, 1
        %s423 = scalar_lea.sflag [#allocation4], %s422
        %s424 = sand.u32 %s41, 1
        %s425 = smul.addr %s424, 64
        %s426 = scalar_lea.vmem [#allocation3], %s425
        // Predicated region
        $region53: #{tpu_custom_call.1} parent=51 // pred_check
          %p427 = pneg %p54
        $region54: #{tpu_custom_call.1} parent=51 // pred_check_branch
          %429 = sbr.rel (%p427) target = $region56
        $region55: #{tpu_custom_call.1} parent=51 // pred_region
          %431 = dma.done %s423, 1024
        $region56: #{tpu_custom_call.1} parent=51 // pred_fallthru
          _
        // Predicated region
        $region57: #{tpu_custom_call.1} parent=51 // pred_check
          %p432 = pneg %p75
        $region58: #{tpu_custom_call.1} parent=51 // pred_check_branch
          %434 = sbr.rel (%p432) target = $region60
        $region59: #{tpu_custom_call.1} parent=51 // pred_region
          %436 = dma.done [#allocation7], 256
        $region60: #{tpu_custom_call.1} parent=51 // pred_fallthru
          _
        // Predicated region
        $region61: #{tpu_custom_call.1} parent=51 // pred_check
          %p437 = pneg %p96
        $region62: #{tpu_custom_call.1} parent=51 // pred_check_branch
          %439 = sbr.rel (%p437) target = $region64
        $region63: #{tpu_custom_call.1} parent=51 // pred_region
          %441 = dma.done [#allocation7], 512
        $region64: #{tpu_custom_call.1} parent=51 // pred_fallthru
          _
        // Predicated region
        $region65: #{tpu_custom_call.1} parent=51 // pred_check
          %p442 = pneg %p138
        $region66: #{tpu_custom_call.1} parent=51 // pred_check_branch
          %444 = sbr.rel (%p442) target = $region68
        $region67: #{tpu_custom_call.1} parent=51 // pred_region
          %446 = dma.done [#allocation10], 512
        $region68: #{tpu_custom_call.1} parent=51 // pred_fallthru
          _
        %s447 = sand.u32 %s33, 1
        %s448 = scalar_lea.sflag [#allocation4], %s447
        %s449 = sand.u32 %s172, 1
        %s450 = smul.addr %s449, 8
        %s451 = scalar_lea.vmem [#allocation11], %s450
        // Predicated region
        $region69: #{tpu_custom_call.1} parent=51 // pred_check
          %p452 = pneg %p185
        $region70: #{tpu_custom_call.1} parent=51 // pred_check_branch
          %454 = sbr.rel (%p452) target = $region72
        $region71: #{tpu_custom_call.1} parent=51 // pred_region
          %456 = dma.done %s448, 128
        $region72: #{tpu_custom_call.1} parent=51 // pred_fallthru
          _
        %s457 = sand.u32 %s33, 1
        %s458 = scalar_lea.sflag [#allocation4], %s457
        %s459 = sand.u32 %s198, 1
        %s460 = smul.addr %s459, 8
        %s461 = scalar_lea.vmem [#allocation12], %s460
        // Predicated region
        $region73: #{tpu_custom_call.1} parent=51 // pred_check
          %p462 = pneg %p211
        $region74: #{tpu_custom_call.1} parent=51 // pred_check_branch
          %464 = sbr.rel (%p462) target = $region76
        $region75: #{tpu_custom_call.1} parent=51 // pred_region
          %466 = dma.done %s458, 128
        $region76: #{tpu_custom_call.1} parent=51 // pred_fallthru
          _
        %s467 = sand.u32 %s33, 1
        %s468 = scalar_lea.sflag [#allocation4], %s467
        %s469 = sand.u32 %s41, 1
        %s470 = smul.addr %s469, 64
        %s471 = scalar_lea.vmem [#allocation3], %s470
        %p472 = pneg %p54
        %p473 = pneg %p51
        %p474 = pneg %p75
        %p475 = pneg %p72
        %p476 = pneg %p96
        %p477 = pneg %p93
        %p478 = pneg %p117
        %p479 = pneg %p114
        %p480 = pneg %p138
        %p481 = pneg %p135
        %p482 = pneg %p159
        %p483 = pneg %p156
        %s484 = sand.u32 %s33, 1
        %s485 = scalar_lea.sflag [#allocation4], %s484
        %s486 = sand.u32 %s172, 1
        %s487 = smul.addr %s486, 8
        %s488 = scalar_lea.vmem [#allocation11], %s487
        %p489 = pneg %p185
        %p490 = pneg %p182
        %s491 = sand.u32 %s33, 1
        %s492 = scalar_lea.sflag [#allocation4], %s491
        %s493 = sand.u32 %s198, 1
        %s494 = smul.addr %s493, 8
        %s495 = scalar_lea.vmem [#allocation12], %s494
        %p496 = pneg %p211
        %p497 = pneg %p208
        %p498 = pneg %p237
        %p499 = pneg %p234
        %s500 = sand.u32 %s224, 1
        %s501 = scalar_lea.sflag [#allocation5], %s500
        %s502 = sand.u32 %s224, 1
        %s503 = smul.addr %s502, 64
        %s504 = scalar_lea.vmem [#allocation13], %s503
        %p505 = pneg %p263
        %p506 = pneg %p260
        %s507 = sand.u32 %s33, 1
        %s508 = scalar_lea.sflag [#allocation15], %s507
        %s509 = sand.u32 %s250, 1
        %s510 = smul.addr %s509, 8
        %s511 = scalar_lea.vmem [#allocation14], %s510
        %p512 = pneg %p289
        %p513 = pneg %p286
        %s514 = sand.u32 %s33, 1
        %s515 = scalar_lea.sflag [#allocation15], %s514
        %s516 = sand.u32 %s276, 1
        %s517 = smul.addr %s516, 8
        %s518 = scalar_lea.vmem [#allocation16], %s517
        %v519 = vld [vmem:[%s426] sm:$0xff]
        %v520 = vld [vmem:[%s426 + $0x8] sm:$0xff]
        %v521 = vld [vmem:[%s426 + $0x10] sm:$0xff]
        %v522 = vld [vmem:[%s426 + $0x18] sm:$0xff]
        %v523 = vld [vmem:[%s426 + $0x20] sm:$0xff]
        %v524 = vld [vmem:[%s426 + $0x28] sm:$0xff]
        %v525 = vld [vmem:[%s426 + $0x30] sm:$0xff]
        %v526 = vld [vmem:[%s426 + $0x38] sm:$0xff]
        %v527 = vld [vmem:[#allocation6] sm:$0xff]
        %v528 = vld [vmem:[#allocation6 + $0x8] sm:$0xff]
        %v529 = vld [vmem:[%s3] sm:$0x1]
        %v531 = vperm.slane %v529, 0
        %vm533 = vcmask 130048
        %v535 = vsel %vm533, %v519, 0
        %v538 = vsel %vm533, %v520, 0
        %v541 = vsel %vm533, %v521, 0
        %v544 = vsel %vm533, %v522, 0
        %v547 = vsel %vm533, %v523, 0
        %v550 = vsel %vm533, %v524, 0
        %v553 = vsel %vm533, %v525, 0
        %v556 = vsel %vm533, %v526, 0
        %558 = vmatpush.msra.mxu0 0.0
        %559 = vmatpush.msra.mxu0 0.0
        %560 = vmatpush.msra.mxu0 0.0
        %561 = vmatpush.msra.mxu0 0.0
        %562 = vmatpush.msra.mxu0 0.0
        %563 = vmatpush.msra.mxu0 0.0
        %564 = vmatpush.msra.mxu0 0.0
        %565 = vmatpush.msra.mxu0 0.0
        %566 = vmatpush.msra.mxu0 0.0
        %567 = vmatpush.msra.mxu0 0.0
        %568 = vmatpush.msra.mxu0 0.0
        %569 = vmatpush.msra.mxu0 0.0
        %570 = vmatpush.msra.mxu0 0.0
        %571 = vmatpush.msra.mxu0 0.0
        %572 = vmatpush.msra.mxu0 %v528
        %573 = vmatpush.msra.mxu0 %v527
        %574 = vmatmul.f32.gmra.mxu0 %v535
        %v575 = vpop.f32.mrf.mxu0
        %v576 = vadd.f32 %v531, %v575
        %577 = vmatmul.f32.gmra.mxu0 %v538
        %v578 = vpop.f32.mrf.mxu0
        %v579 = vadd.f32 %v531, %v578
        %580 = vmatmul.f32.gmra.mxu0 %v541
        %v581 = vpop.f32.mrf.mxu0
        %v582 = vadd.f32 %v531, %v581
        %583 = vmatmul.f32.gmra.mxu0 %v544
        %v584 = vpop.f32.mrf.mxu0
        %v585 = vadd.f32 %v531, %v584
        %586 = vmatmul.f32.gmra.mxu0 %v547
        %v587 = vpop.f32.mrf.mxu0
        %v588 = vadd.f32 %v531, %v587
        %589 = vmatmul.f32.gmra.mxu0 %v550
        %v590 = vpop.f32.mrf.mxu0
        %v591 = vadd.f32 %v531, %v590
        %592 = vmatmul.f32.gmra.mxu0 %v553
        %v593 = vpop.f32.mrf.mxu0
        %v594 = vadd.f32 %v531, %v593
        %595 = vmatmul.f32.gmra.mxu0 %v556
        %v596 = vpop.f32.mrf.mxu0
        %v597 = vadd.f32 %v531, %v596
        %598 = vdwg.mxu0
        %vm599 = vcmask 261120
        %600 = vst.msk [vmem:[#allocation2] sm:$0xff] %vm599, %v576
        %601 = vst.msk [vmem:[#allocation2 + $0x8] sm:$0xff] %vm599, %v579
        %602 = vst.msk [vmem:[#allocation2 + $0x10] sm:$0xff] %vm599, %v582
        %603 = vst.msk [vmem:[#allocation2 + $0x18] sm:$0xff] %vm599, %v585
        %604 = vst.msk [vmem:[#allocation2 + $0x20] sm:$0xff] %vm599, %v588
        %605 = vst.msk [vmem:[#allocation2 + $0x28] sm:$0xff] %vm599, %v591
        %606 = vst.msk [vmem:[#allocation2 + $0x30] sm:$0xff] %vm599, %v594
        %607 = vst.msk [vmem:[#allocation2 + $0x38] sm:$0xff] %vm599, %v597
        %v608 = vld [vmem:[#allocation8] sm:$0xff]
        %v609 = vld [vmem:[#allocation8 + $0x8] sm:$0xff]
        %v610 = vld [vmem:[#allocation8 + $0x10] sm:$0xff]
        %v611 = vld [vmem:[#allocation8 + $0x18] sm:$0xff]
        %v612 = vld [vmem:[#allocation9] sm:$0xff]
        %v613 = vld [vmem:[#allocation9 + $0x8] sm:$0xff]
        %v614 = vld [vmem:[#allocation9 + $0x10] sm:$0xff]
        %v615 = vld [vmem:[#allocation9 + $0x18] sm:$0xff]
        %v616 = vld [vmem:[%s5] sm:$0x1]
        %v618 = vperm.slane %v616, 0
        %v620 = vld [vmem:[%s451] sm:$0xff]
        %v621 = vld [vmem:[%s461] sm:$0xff]
        %v622 = vld [vmem:[#allocation2] sm:$0xff]
        %v624 = vsel %vm599, %v620, 0
        %626 = vmatpush.msra.mxu0 0.0
        %627 = vmatpush.msra.mxu0 0.0
        %628 = vmatpush.msra.mxu0 0.0
        %629 = vmatpush.msra.mxu0 0.0
        %630 = vmatpush.msra.mxu0 0.0
        %631 = vmatpush.msra.mxu0 0.0
        %632 = vmatpush.msra.mxu0 0.0
        %633 = vmatpush.msra.mxu0 0.0
        %634 = vmatpush.msra.mxu0 0.0
        %635 = vmatpush.msra.mxu0 0.0
        %636 = vmatpush.msra.mxu0 0.0
        %637 = vmatpush.msra.mxu0 0.0
        %638 = vmatpush.msra.mxu0 %v611
        %639 = vmatpush.msra.mxu0 %v610
        %640 = vmatpush.msra.mxu0 %v609
        %641 = vmatpush.msra.mxu0 %v608
        %642 = vmatmul.f32.gmra.mxu0 %v624
        %v643 = vpop.f32.mrf.mxu0
        %v644 = vadd.f32 0.0, %v643
        %645 = vdwg.mxu0
        %v646 = vadd.f32 %v622, %v644
        %v647 = vxor.u32 %v646, 2147483648
        %v648 = vmul.f32 %v647, 1.442695
        %v649 = vpow.pop %v648
        %v650 = vadd.f32 %v649, 1.0
        %v651 = vrcp.pop %v650
        %v652 = vmul.f32 %v650, %v651
        %v653 = vsub.f32 1.0, %v652
        %v654 = vmul.f32 %v651, %v653
        %v655 = vadd.f32 %v651, %v654
        %vm656 = vweird.f32 %v650
        %vm657 = vweird.f32 %v651
        %vm658 = vmor %vm656, %vm657
        %v659 = vsel %vm658, %v651, %v655
        %v660 = vand.u32 2147483647, %v650
        %vm661 = vcmp.eq.f32.partialorder %v660, 8.507059e+37
        %v662 = vand.u32 %v650, 2147483648
        %v663 = vor.u32 1.1754944e-38, %v662
        %v664 = vsel %vm661, %v663, %v659
        %v665 = vmul.f32 1.0, %v664
        %v666 = vsub.f32 %v665, %v620
        %v667 = vmul.f32 %v666, 0.1
        %v668 = vadd.f32 %v620, %v667
        %v670 = vsel %vm599, %v668, 0
        %672 = vmatpush.msra.mxu0 0.0
        %673 = vmatpush.msra.mxu0 0.0
        %674 = vmatpush.msra.mxu0 0.0
        %675 = vmatpush.msra.mxu0 0.0
        %676 = vmatpush.msra.mxu0 0.0
        %677 = vmatpush.msra.mxu0 0.0
        %678 = vmatpush.msra.mxu0 0.0
        %679 = vmatpush.msra.mxu0 0.0
        %680 = vmatpush.msra.mxu0 0.0
        %681 = vmatpush.msra.mxu0 0.0
        %682 = vmatpush.msra.mxu0 0.0
        %683 = vmatpush.msra.mxu0 0.0
        %684 = vmatpush.msra.mxu0 %v615
        %685 = vmatpush.msra.mxu0 %v614
        %686 = vmatpush.msra.mxu0 %v613
        %687 = vmatpush.msra.mxu0 %v612
        %688 = vmatmul.f32.gmra.mxu0 %v670
        %v689 = vpop.f32.mrf.mxu0
        %v690 = vadd.f32 %v618, %v689
        %691 = vdwg.mxu0
        %v692 = vxor.u32 %v690, 2147483648
        %v693 = vmul.f32 %v692, 1.442695
        %v694 = vpow.pop %v693
        %v695 = vadd.f32 %v694, 1.0
        %v696 = vrcp.pop %v695
        %v697 = vmul.f32 %v695, %v696
        %v698 = vsub.f32 1.0, %v697
        %v699 = vmul.f32 %v696, %v698
        %v700 = vadd.f32 %v696, %v699
        %vm701 = vweird.f32 %v695
        %vm702 = vweird.f32 %v696
        %vm703 = vmor %vm701, %vm702
        %v704 = vsel %vm703, %v696, %v700
        %v705 = vand.u32 2147483647, %v695
        %vm706 = vcmp.eq.f32.partialorder %v705, 8.507059e+37
        %v707 = vand.u32 %v695, 2147483648
        %v708 = vor.u32 1.1754944e-38, %v707
        %v709 = vsel %vm706, %v708, %v704
        %v710 = vmul.f32 1.0, %v709
        %v711 = vsub.f32 %v710, %v621
        %v712 = vmul.f32 %v711, 0.1
        %v713 = vadd.f32 %v621, %v712
        %714 = vst [vmem:[%s504] sm:$0xff] %v713
        %s715 = scalar_lea.vmem [#allocation2], 8
        %v716 = vld [vmem:[%s715] sm:$0xff]
        %717 = vmatpush.msra.mxu0 0.0
        %718 = vmatpush.msra.mxu0 0.0
        %719 = vmatpush.msra.mxu0 0.0
        %720 = vmatpush.msra.mxu0 0.0
        %721 = vmatpush.msra.mxu0 0.0
        %722 = vmatpush.msra.mxu0 0.0
        %723 = vmatpush.msra.mxu0 0.0
        %724 = vmatpush.msra.mxu0 0.0
        %725 = vmatpush.msra.mxu0 0.0
        %726 = vmatpush.msra.mxu0 0.0
        %727 = vmatpush.msra.mxu0 0.0
        %728 = vmatpush.msra.mxu0 0.0
        %729 = vmatpush.msra.mxu0 %v611
        %730 = vmatpush.msra.mxu0 %v610
        %731 = vmatpush.msra.mxu0 %v609
        %732 = vmatpush.msra.mxu0 %v608
        %733 = vmatmul.f32.gmra.mxu0 %v670
        %v734 = vpop.f32.mrf.mxu0
        %v735 = vadd.f32 0.0, %v734
        %736 = vdwg.mxu0
        %v737 = vadd.f32 %v716, %v735
        %v738 = vxor.u32 %v737, 2147483648
        %v739 = vmul.f32 %v738, 1.442695
        %v740 = vpow.pop %v739
        %v741 = vadd.f32 %v740, 1.0
        %v742 = vrcp.pop %v741
        %v743 = vmul.f32 %v741, %v742
        %v744 = vsub.f32 1.0, %v743
        %v745 = vmul.f32 %v742, %v744
        %v746 = vadd.f32 %v742, %v745
        %vm747 = vweird.f32 %v741
        %vm748 = vweird.f32 %v742
        %vm749 = vmor %vm747, %vm748
        %v750 = vsel %vm749, %v742, %v746
        %v751 = vand.u32 2147483647, %v741
        %vm752 = vcmp.eq.f32.partialorder %v751, 8.507059e+37
        %v753 = vand.u32 %v741, 2147483648
        %v754 = vor.u32 1.1754944e-38, %v753
        %v755 = vsel %vm752, %v754, %v750
        %v756 = vmul.f32 1.0, %v755
        %v757 = vsub.f32 %v756, %v668
        %v758 = vmul.f32 %v757, 0.1
        %v759 = vadd.f32 %v668, %v758
        %v761 = vsel %vm599, %v759, 0
        %763 = vmatpush.msra.mxu0 0.0
        %764 = vmatpush.msra.mxu0 0.0
        %765 = vmatpush.msra.mxu0 0.0
        %766 = vmatpush.msra.mxu0 0.0
        %767 = vmatpush.msra.mxu0 0.0
        %768 = vmatpush.msra.mxu0 0.0
        %769 = vmatpush.msra.mxu0 0.0
        %770 = vmatpush.msra.mxu0 0.0
        %771 = vmatpush.msra.mxu0 0.0
        %772 = vmatpush.msra.mxu0 0.0
        %773 = vmatpush.msra.mxu0 0.0
        %774 = vmatpush.msra.mxu0 0.0
        %775 = vmatpush.msra.mxu0 %v615
        %776 = vmatpush.msra.mxu0 %v614
        %777 = vmatpush.msra.mxu0 %v613
        %778 = vmatpush.msra.mxu0 %v612
        %779 = vmatmul.f32.gmra.mxu0 %v761
        %v780 = vpop.f32.mrf.mxu0
        %v781 = vadd.f32 %v618, %v780
        %782 = vdwg.mxu0
        %v783 = vxor.u32 %v781, 2147483648
        %v784 = vmul.f32 %v783, 1.442695
        %v785 = vpow.pop %v784
        %v786 = vadd.f32 %v785, 1.0
        %v787 = vrcp.pop %v786
        %v788 = vmul.f32 %v786, %v787
        %v789 = vsub.f32 1.0, %v788
        %v790 = vmul.f32 %v787, %v789
        %v791 = vadd.f32 %v787, %v790
        %vm792 = vweird.f32 %v786
        %vm793 = vweird.f32 %v787
        %vm794 = vmor %vm792, %vm793
        %v795 = vsel %vm794, %v787, %v791
        %v796 = vand.u32 2147483647, %v786
        %vm797 = vcmp.eq.f32.partialorder %v796, 8.507059e+37
        %v798 = vand.u32 %v786, 2147483648
        %v799 = vor.u32 1.1754944e-38, %v798
        %v800 = vsel %vm797, %v799, %v795
        %v801 = vmul.f32 1.0, %v800
        %v802 = vsub.f32 %v801, %v713
        %v803 = vmul.f32 %v802, 0.1
        %v804 = vadd.f32 %v713, %v803
        %s805 = scalar_lea.vmem %s504, 8 [#allocation13]
        %806 = vst [vmem:[%s805] sm:$0xff] %v804
        %s807 = scalar_lea.vmem [#allocation2], 16
        %v808 = vld [vmem:[%s807] sm:$0xff]
        %809 = vmatpush.msra.mxu0 0.0
        %810 = vmatpush.msra.mxu0 0.0
        %811 = vmatpush.msra.mxu0 0.0
        %812 = vmatpush.msra.mxu0 0.0
        %813 = vmatpush.msra.mxu0 0.0
        %814 = vmatpush.msra.mxu0 0.0
        %815 = vmatpush.msra.mxu0 0.0
        %816 = vmatpush.msra.mxu0 0.0
        %817 = vmatpush.msra.mxu0 0.0
        %818 = vmatpush.msra.mxu0 0.0
        %819 = vmatpush.msra.mxu0 0.0
        %820 = vmatpush.msra.mxu0 0.0
        %821 = vmatpush.msra.mxu0 %v611
        %822 = vmatpush.msra.mxu0 %v610
        %823 = vmatpush.msra.mxu0 %v609
        %824 = vmatpush.msra.mxu0 %v608
        %825 = vmatmul.f32.gmra.mxu0 %v761
        %v826 = vpop.f32.mrf.mxu0
        %v827 = vadd.f32 0.0, %v826
        %828 = vdwg.mxu0
        %v829 = vadd.f32 %v808, %v827
        %v830 = vxor.u32 %v829, 2147483648
        %v831 = vmul.f32 %v830, 1.442695
        %v832 = vpow.pop %v831
        %v833 = vadd.f32 %v832, 1.0
        %v834 = vrcp.pop %v833
        %v835 = vmul.f32 %v833, %v834
        %v836 = vsub.f32 1.0, %v835
        %v837 = vmul.f32 %v834, %v836
        %v838 = vadd.f32 %v834, %v837
        %vm839 = vweird.f32 %v833
        %vm840 = vweird.f32 %v834
        %vm841 = vmor %vm839, %vm840
        %v842 = vsel %vm841, %v834, %v838
        %v843 = vand.u32 2147483647, %v833
        %vm844 = vcmp.eq.f32.partialorder %v843, 8.507059e+37
        %v845 = vand.u32 %v833, 2147483648
        %v846 = vor.u32 1.1754944e-38, %v845
        %v847 = vsel %vm844, %v846, %v842
        %v848 = vmul.f32 1.0, %v847
        %v849 = vsub.f32 %v848, %v759
        %v850 = vmul.f32 %v849, 0.1
        %v851 = vadd.f32 %v759, %v850
        %v853 = vsel %vm599, %v851, 0
        %855 = vmatpush.msra.mxu0 0.0
        %856 = vmatpush.msra.mxu0 0.0
        %857 = vmatpush.msra.mxu0 0.0
        %858 = vmatpush.msra.mxu0 0.0
        %859 = vmatpush.msra.mxu0 0.0
        %860 = vmatpush.msra.mxu0 0.0
        %861 = vmatpush.msra.mxu0 0.0
        %862 = vmatpush.msra.mxu0 0.0
        %863 = vmatpush.msra.mxu0 0.0
        %864 = vmatpush.msra.mxu0 0.0
        %865 = vmatpush.msra.mxu0 0.0
        %866 = vmatpush.msra.mxu0 0.0
        %867 = vmatpush.msra.mxu0 %v615
        %868 = vmatpush.msra.mxu0 %v614
        %869 = vmatpush.msra.mxu0 %v613
        %870 = vmatpush.msra.mxu0 %v612
        %871 = vmatmul.f32.gmra.mxu0 %v853
        %v872 = vpop.f32.mrf.mxu0
        %v873 = vadd.f32 %v618, %v872
        %874 = vdwg.mxu0
        %v875 = vxor.u32 %v873, 2147483648
        %v876 = vmul.f32 %v875, 1.442695
        %v877 = vpow.pop %v876
        %v878 = vadd.f32 %v877, 1.0
        %v879 = vrcp.pop %v878
        %v880 = vmul.f32 %v878, %v879
        %v881 = vsub.f32 1.0, %v880
        %v882 = vmul.f32 %v879, %v881
        %v883 = vadd.f32 %v879, %v882
        %vm884 = vweird.f32 %v878
        %vm885 = vweird.f32 %v879
        %vm886 = vmor %vm884, %vm885
        %v887 = vsel %vm886, %v879, %v883
        %v888 = vand.u32 2147483647, %v878
        %vm889 = vcmp.eq.f32.partialorder %v888, 8.507059e+37
        %v890 = vand.u32 %v878, 2147483648
        %v891 = vor.u32 1.1754944e-38, %v890
        %v892 = vsel %vm889, %v891, %v887
        %v893 = vmul.f32 1.0, %v892
        %v894 = vsub.f32 %v893, %v804
        %v895 = vmul.f32 %v894, 0.1
        %v896 = vadd.f32 %v804, %v895
        %s897 = scalar_lea.vmem %s504, 16 [#allocation13]
        %898 = vst [vmem:[%s897] sm:$0xff] %v896
        %s899 = scalar_lea.vmem [#allocation2], 24
        %v900 = vld [vmem:[%s899] sm:$0xff]
        %901 = vmatpush.msra.mxu0 0.0
        %902 = vmatpush.msra.mxu0 0.0
        %903 = vmatpush.msra.mxu0 0.0
        %904 = vmatpush.msra.mxu0 0.0
        %905 = vmatpush.msra.mxu0 0.0
        %906 = vmatpush.msra.mxu0 0.0
        %907 = vmatpush.msra.mxu0 0.0
        %908 = vmatpush.msra.mxu0 0.0
        %909 = vmatpush.msra.mxu0 0.0
        %910 = vmatpush.msra.mxu0 0.0
        %911 = vmatpush.msra.mxu0 0.0
        %912 = vmatpush.msra.mxu0 0.0
        %913 = vmatpush.msra.mxu0 %v611
        %914 = vmatpush.msra.mxu0 %v610
        %915 = vmatpush.msra.mxu0 %v609
        %916 = vmatpush.msra.mxu0 %v608
        %917 = vmatmul.f32.gmra.mxu0 %v853
        %v918 = vpop.f32.mrf.mxu0
        %v919 = vadd.f32 0.0, %v918
        %920 = vdwg.mxu0
        %v921 = vadd.f32 %v900, %v919
        %v922 = vxor.u32 %v921, 2147483648
        %v923 = vmul.f32 %v922, 1.442695
        %v924 = vpow.pop %v923
        %v925 = vadd.f32 %v924, 1.0
        %v926 = vrcp.pop %v925
        %v927 = vmul.f32 %v925, %v926
        %v928 = vsub.f32 1.0, %v927
        %v929 = vmul.f32 %v926, %v928
        %v930 = vadd.f32 %v926, %v929
        %vm931 = vweird.f32 %v925
        %vm932 = vweird.f32 %v926
        %vm933 = vmor %vm931, %vm932
        %v934 = vsel %vm933, %v926, %v930
        %v935 = vand.u32 2147483647, %v925
        %vm936 = vcmp.eq.f32.partialorder %v935, 8.507059e+37
        %v937 = vand.u32 %v925, 2147483648
        %v938 = vor.u32 1.1754944e-38, %v937
        %v939 = vsel %vm936, %v938, %v934
        %v940 = vmul.f32 1.0, %v939
        %v941 = vsub.f32 %v940, %v851
        %v942 = vmul.f32 %v941, 0.1
        %v943 = vadd.f32 %v851, %v942
        %v945 = vsel %vm599, %v943, 0
        %947 = vmatpush.msra.mxu0 0.0
        %948 = vmatpush.msra.mxu0 0.0
        %949 = vmatpush.msra.mxu0 0.0
        %950 = vmatpush.msra.mxu0 0.0
        %951 = vmatpush.msra.mxu0 0.0
        %952 = vmatpush.msra.mxu0 0.0
        %953 = vmatpush.msra.mxu0 0.0
        %954 = vmatpush.msra.mxu0 0.0
        %955 = vmatpush.msra.mxu0 0.0
        %956 = vmatpush.msra.mxu0 0.0
        %957 = vmatpush.msra.mxu0 0.0
        %958 = vmatpush.msra.mxu0 0.0
        %959 = vmatpush.msra.mxu0 %v615
        %960 = vmatpush.msra.mxu0 %v614
        %961 = vmatpush.msra.mxu0 %v613
        %962 = vmatpush.msra.mxu0 %v612
        %963 = vmatmul.f32.gmra.mxu0 %v945
        %v964 = vpop.f32.mrf.mxu0
        %v965 = vadd.f32 %v618, %v964
        %966 = vdwg.mxu0
        %v967 = vxor.u32 %v965, 2147483648
        %v968 = vmul.f32 %v967, 1.442695
        %v969 = vpow.pop %v968
        %v970 = vadd.f32 %v969, 1.0
        %v971 = vrcp.pop %v970
        %v972 = vmul.f32 %v970, %v971
        %v973 = vsub.f32 1.0, %v972
        %v974 = vmul.f32 %v971, %v973
        %v975 = vadd.f32 %v971, %v974
        %vm976 = vweird.f32 %v970
        %vm977 = vweird.f32 %v971
        %vm978 = vmor %vm976, %vm977
        %v979 = vsel %vm978, %v971, %v975
        %v980 = vand.u32 2147483647, %v970
        %vm981 = vcmp.eq.f32.partialorder %v980, 8.507059e+37
        %v982 = vand.u32 %v970, 2147483648
        %v983 = vor.u32 1.1754944e-38, %v982
        %v984 = vsel %vm981, %v983, %v979
        %v985 = vmul.f32 1.0, %v984
        %v986 = vsub.f32 %v985, %v896
        %v987 = vmul.f32 %v986, 0.1
        %v988 = vadd.f32 %v896, %v987
        %s989 = scalar_lea.vmem %s504, 24 [#allocation13]
        %990 = vst [vmem:[%s989] sm:$0xff] %v988
        %s991 = scalar_lea.vmem [#allocation2], 32
        %v992 = vld [vmem:[%s991] sm:$0xff]
        %993 = vmatpush.msra.mxu0 0.0
        %994 = vmatpush.msra.mxu0 0.0
        %995 = vmatpush.msra.mxu0 0.0
        %996 = vmatpush.msra.mxu0 0.0
        %997 = vmatpush.msra.mxu0 0.0
        %998 = vmatpush.msra.mxu0 0.0
        %999 = vmatpush.msra.mxu0 0.0
        %1000 = vmatpush.msra.mxu0 0.0
        %1001 = vmatpush.msra.mxu0 0.0
        %1002 = vmatpush.msra.mxu0 0.0
        %1003 = vmatpush.msra.mxu0 0.0
        %1004 = vmatpush.msra.mxu0 0.0
        %1005 = vmatpush.msra.mxu0 %v611
        %1006 = vmatpush.msra.mxu0 %v610
        %1007 = vmatpush.msra.mxu0 %v609
        %1008 = vmatpush.msra.mxu0 %v608
        %1009 = vmatmul.f32.gmra.mxu0 %v945
        %v1010 = vpop.f32.mrf.mxu0
        %v1011 = vadd.f32 0.0, %v1010
        %1012 = vdwg.mxu0
        %v1013 = vadd.f32 %v992, %v1011
        %v1014 = vxor.u32 %v1013, 2147483648
        %v1015 = vmul.f32 %v1014, 1.442695
        %v1016 = vpow.pop %v1015
        %v1017 = vadd.f32 %v1016, 1.0
        %v1018 = vrcp.pop %v1017
        %v1019 = vmul.f32 %v1017, %v1018
        %v1020 = vsub.f32 1.0, %v1019
        %v1021 = vmul.f32 %v1018, %v1020
        %v1022 = vadd.f32 %v1018, %v1021
        %vm1023 = vweird.f32 %v1017
        %vm1024 = vweird.f32 %v1018
        %vm1025 = vmor %vm1023, %vm1024
        %v1026 = vsel %vm1025, %v1018, %v1022
        %v1027 = vand.u32 2147483647, %v1017
        %vm1028 = vcmp.eq.f32.partialorder %v1027, 8.507059e+37
        %v1029 = vand.u32 %v1017, 2147483648
        %v1030 = vor.u32 1.1754944e-38, %v1029
        %v1031 = vsel %vm1028, %v1030, %v1026
        %v1032 = vmul.f32 1.0, %v1031
        %v1033 = vsub.f32 %v1032, %v943
        %v1034 = vmul.f32 %v1033, 0.1
        %v1035 = vadd.f32 %v943, %v1034
        %v1037 = vsel %vm599, %v1035, 0
        %1039 = vmatpush.msra.mxu0 0.0
        %1040 = vmatpush.msra.mxu0 0.0
        %1041 = vmatpush.msra.mxu0 0.0
        %1042 = vmatpush.msra.mxu0 0.0
        %1043 = vmatpush.msra.mxu0 0.0
        %1044 = vmatpush.msra.mxu0 0.0
        %1045 = vmatpush.msra.mxu0 0.0
        %1046 = vmatpush.msra.mxu0 0.0
        %1047 = vmatpush.msra.mxu0 0.0
        %1048 = vmatpush.msra.mxu0 0.0
        %1049 = vmatpush.msra.mxu0 0.0
        %1050 = vmatpush.msra.mxu0 0.0
        %1051 = vmatpush.msra.mxu0 %v615
        %1052 = vmatpush.msra.mxu0 %v614
        %1053 = vmatpush.msra.mxu0 %v613
        %1054 = vmatpush.msra.mxu0 %v612
        %1055 = vmatmul.f32.gmra.mxu0 %v1037
        %v1056 = vpop.f32.mrf.mxu0
        %v1057 = vadd.f32 %v618, %v1056
        %1058 = vdwg.mxu0
        %v1059 = vxor.u32 %v1057, 2147483648
        %v1060 = vmul.f32 %v1059, 1.442695
        %v1061 = vpow.pop %v1060
        %v1062 = vadd.f32 %v1061, 1.0
        %v1063 = vrcp.pop %v1062
        %v1064 = vmul.f32 %v1062, %v1063
        %v1065 = vsub.f32 1.0, %v1064
        %v1066 = vmul.f32 %v1063, %v1065
        %v1067 = vadd.f32 %v1063, %v1066
        %vm1068 = vweird.f32 %v1062
        %vm1069 = vweird.f32 %v1063
        %vm1070 = vmor %vm1068, %vm1069
        %v1071 = vsel %vm1070, %v1063, %v1067
        %v1072 = vand.u32 2147483647, %v1062
        %vm1073 = vcmp.eq.f32.partialorder %v1072, 8.507059e+37
        %v1074 = vand.u32 %v1062, 2147483648
        %v1075 = vor.u32 1.1754944e-38, %v1074
        %v1076 = vsel %vm1073, %v1075, %v1071
        %v1077 = vmul.f32 1.0, %v1076
        %v1078 = vsub.f32 %v1077, %v988
        %v1079 = vmul.f32 %v1078, 0.1
        %v1080 = vadd.f32 %v988, %v1079
        %s1081 = scalar_lea.vmem %s504, 32 [#allocation13]
        %1082 = vst [vmem:[%s1081] sm:$0xff] %v1080
        %s1083 = scalar_lea.vmem [#allocation2], 40
        %v1084 = vld [vmem:[%s1083] sm:$0xff]
        %1085 = vmatpush.msra.mxu0 0.0
        %1086 = vmatpush.msra.mxu0 0.0
        %1087 = vmatpush.msra.mxu0 0.0
        %1088 = vmatpush.msra.mxu0 0.0
        %1089 = vmatpush.msra.mxu0 0.0
        %1090 = vmatpush.msra.mxu0 0.0
        %1091 = vmatpush.msra.mxu0 0.0
        %1092 = vmatpush.msra.mxu0 0.0
        %1093 = vmatpush.msra.mxu0 0.0
        %1094 = vmatpush.msra.mxu0 0.0
        %1095 = vmatpush.msra.mxu0 0.0
        %1096 = vmatpush.msra.mxu0 0.0
        %1097 = vmatpush.msra.mxu0 %v611
        %1098 = vmatpush.msra.mxu0 %v610
        %1099 = vmatpush.msra.mxu0 %v609
        %1100 = vmatpush.msra.mxu0 %v608
        %1101 = vmatmul.f32.gmra.mxu0 %v1037
        %v1102 = vpop.f32.mrf.mxu0
        %v1103 = vadd.f32 0.0, %v1102
        %1104 = vdwg.mxu0
        %v1105 = vadd.f32 %v1084, %v1103
        %v1106 = vxor.u32 %v1105, 2147483648
        %v1107 = vmul.f32 %v1106, 1.442695
        %v1108 = vpow.pop %v1107
        %v1109 = vadd.f32 %v1108, 1.0
        %v1110 = vrcp.pop %v1109
        %v1111 = vmul.f32 %v1109, %v1110
        %v1112 = vsub.f32 1.0, %v1111
        %v1113 = vmul.f32 %v1110, %v1112
        %v1114 = vadd.f32 %v1110, %v1113
        %vm1115 = vweird.f32 %v1109
        %vm1116 = vweird.f32 %v1110
        %vm1117 = vmor %vm1115, %vm1116
        %v1118 = vsel %vm1117, %v1110, %v1114
        %v1119 = vand.u32 2147483647, %v1109
        %vm1120 = vcmp.eq.f32.partialorder %v1119, 8.507059e+37
        %v1121 = vand.u32 %v1109, 2147483648
        %v1122 = vor.u32 1.1754944e-38, %v1121
        %v1123 = vsel %vm1120, %v1122, %v1118
        %v1124 = vmul.f32 1.0, %v1123
        %v1125 = vsub.f32 %v1124, %v1035
        %v1126 = vmul.f32 %v1125, 0.1
        %v1127 = vadd.f32 %v1035, %v1126
        %v1129 = vsel %vm599, %v1127, 0
        %1131 = vmatpush.msra.mxu0 0.0
        %1132 = vmatpush.msra.mxu0 0.0
        %1133 = vmatpush.msra.mxu0 0.0
        %1134 = vmatpush.msra.mxu0 0.0
        %1135 = vmatpush.msra.mxu0 0.0
        %1136 = vmatpush.msra.mxu0 0.0
        %1137 = vmatpush.msra.mxu0 0.0
        %1138 = vmatpush.msra.mxu0 0.0
        %1139 = vmatpush.msra.mxu0 0.0
        %1140 = vmatpush.msra.mxu0 0.0
        %1141 = vmatpush.msra.mxu0 0.0
        %1142 = vmatpush.msra.mxu0 0.0
        %1143 = vmatpush.msra.mxu0 %v615
        %1144 = vmatpush.msra.mxu0 %v614
        %1145 = vmatpush.msra.mxu0 %v613
        %1146 = vmatpush.msra.mxu0 %v612
        %1147 = vmatmul.f32.gmra.mxu0 %v1129
        %v1148 = vpop.f32.mrf.mxu0
        %v1149 = vadd.f32 %v618, %v1148
        %1150 = vdwg.mxu0
        %v1151 = vxor.u32 %v1149, 2147483648
        %v1152 = vmul.f32 %v1151, 1.442695
        %v1153 = vpow.pop %v1152
        %v1154 = vadd.f32 %v1153, 1.0
        %v1155 = vrcp.pop %v1154
        %v1156 = vmul.f32 %v1154, %v1155
        %v1157 = vsub.f32 1.0, %v1156
        %v1158 = vmul.f32 %v1155, %v1157
        %v1159 = vadd.f32 %v1155, %v1158
        %vm1160 = vweird.f32 %v1154
        %vm1161 = vweird.f32 %v1155
        %vm1162 = vmor %vm1160, %vm1161
        %v1163 = vsel %vm1162, %v1155, %v1159
        %v1164 = vand.u32 2147483647, %v1154
        %vm1165 = vcmp.eq.f32.partialorder %v1164, 8.507059e+37
        %v1166 = vand.u32 %v1154, 2147483648
        %v1167 = vor.u32 1.1754944e-38, %v1166
        %v1168 = vsel %vm1165, %v1167, %v1163
        %v1169 = vmul.f32 1.0, %v1168
        %v1170 = vsub.f32 %v1169, %v1080
        %v1171 = vmul.f32 %v1170, 0.1
        %v1172 = vadd.f32 %v1080, %v1171
        %s1173 = scalar_lea.vmem %s504, 40 [#allocation13]
        %1174 = vst [vmem:[%s1173] sm:$0xff] %v1172
        %s1175 = scalar_lea.vmem [#allocation2], 48
        %v1176 = vld [vmem:[%s1175] sm:$0xff]
        %1177 = vmatpush.msra.mxu0 0.0
        %1178 = vmatpush.msra.mxu0 0.0
        %1179 = vmatpush.msra.mxu0 0.0
        %1180 = vmatpush.msra.mxu0 0.0
        %1181 = vmatpush.msra.mxu0 0.0
        %1182 = vmatpush.msra.mxu0 0.0
        %1183 = vmatpush.msra.mxu0 0.0
        %1184 = vmatpush.msra.mxu0 0.0
        %1185 = vmatpush.msra.mxu0 0.0
        %1186 = vmatpush.msra.mxu0 0.0
        %1187 = vmatpush.msra.mxu0 0.0
        %1188 = vmatpush.msra.mxu0 0.0
        %1189 = vmatpush.msra.mxu0 %v611
        %1190 = vmatpush.msra.mxu0 %v610
        %1191 = vmatpush.msra.mxu0 %v609
        %1192 = vmatpush.msra.mxu0 %v608
        %1193 = vmatmul.f32.gmra.mxu0 %v1129
        %v1194 = vpop.f32.mrf.mxu0
        %v1195 = vadd.f32 0.0, %v1194
        %1196 = vdwg.mxu0
        %v1197 = vadd.f32 %v1176, %v1195
        %v1198 = vxor.u32 %v1197, 2147483648
        %v1199 = vmul.f32 %v1198, 1.442695
        %v1200 = vpow.pop %v1199
        %v1201 = vadd.f32 %v1200, 1.0
        %v1202 = vrcp.pop %v1201
        %v1203 = vmul.f32 %v1201, %v1202
        %v1204 = vsub.f32 1.0, %v1203
        %v1205 = vmul.f32 %v1202, %v1204
        %v1206 = vadd.f32 %v1202, %v1205
        %vm1207 = vweird.f32 %v1201
        %vm1208 = vweird.f32 %v1202
        %vm1209 = vmor %vm1207, %vm1208
        %v1210 = vsel %vm1209, %v1202, %v1206
        %v1211 = vand.u32 2147483647, %v1201
        %vm1212 = vcmp.eq.f32.partialorder %v1211, 8.507059e+37
        %v1213 = vand.u32 %v1201, 2147483648
        %v1214 = vor.u32 1.1754944e-38, %v1213
        %v1215 = vsel %vm1212, %v1214, %v1210
        %v1216 = vmul.f32 1.0, %v1215
        %v1217 = vsub.f32 %v1216, %v1127
        %v1218 = vmul.f32 %v1217, 0.1
        %v1219 = vadd.f32 %v1127, %v1218
        %v1221 = vsel %vm599, %v1219, 0
        %1223 = vmatpush.msra.mxu0 0.0
        %1224 = vmatpush.msra.mxu0 0.0
        %1225 = vmatpush.msra.mxu0 0.0
        %1226 = vmatpush.msra.mxu0 0.0
        %1227 = vmatpush.msra.mxu0 0.0
        %1228 = vmatpush.msra.mxu0 0.0
        %1229 = vmatpush.msra.mxu0 0.0
        %1230 = vmatpush.msra.mxu0 0.0
        %1231 = vmatpush.msra.mxu0 0.0
        %1232 = vmatpush.msra.mxu0 0.0
        %1233 = vmatpush.msra.mxu0 0.0
        %1234 = vmatpush.msra.mxu0 0.0
        %1235 = vmatpush.msra.mxu0 %v615
        %1236 = vmatpush.msra.mxu0 %v614
        %1237 = vmatpush.msra.mxu0 %v613
        %1238 = vmatpush.msra.mxu0 %v612
        %1239 = vmatmul.f32.gmra.mxu0 %v1221
        %v1240 = vpop.f32.mrf.mxu0
        %v1241 = vadd.f32 %v618, %v1240
        %1242 = vdwg.mxu0
        %v1243 = vxor.u32 %v1241, 2147483648
        %v1244 = vmul.f32 %v1243, 1.442695
        %v1245 = vpow.pop %v1244
        %v1246 = vadd.f32 %v1245, 1.0
        %v1247 = vrcp.pop %v1246
        %v1248 = vmul.f32 %v1246, %v1247
        %v1249 = vsub.f32 1.0, %v1248
        %v1250 = vmul.f32 %v1247, %v1249
        %v1251 = vadd.f32 %v1247, %v1250
        %vm1252 = vweird.f32 %v1246
        %vm1253 = vweird.f32 %v1247
        %vm1254 = vmor %vm1252, %vm1253
        %v1255 = vsel %vm1254, %v1247, %v1251
        %v1256 = vand.u32 2147483647, %v1246
        %vm1257 = vcmp.eq.f32.partialorder %v1256, 8.507059e+37
        %v1258 = vand.u32 %v1246, 2147483648
        %v1259 = vor.u32 1.1754944e-38, %v1258
        %v1260 = vsel %vm1257, %v1259, %v1255
        %v1261 = vmul.f32 1.0, %v1260
        %v1262 = vsub.f32 %v1261, %v1172
        %v1263 = vmul.f32 %v1262, 0.1
        %v1264 = vadd.f32 %v1172, %v1263
        %s1265 = scalar_lea.vmem %s504, 48 [#allocation13]
        %1266 = vst [vmem:[%s1265] sm:$0xff] %v1264
        %s1267 = scalar_lea.vmem [#allocation2], 56
        %v1268 = vld [vmem:[%s1267] sm:$0xff]
        %1269 = vmatpush.msra.mxu0 0.0
        %1270 = vmatpush.msra.mxu0 0.0
        %1271 = vmatpush.msra.mxu0 0.0
        %1272 = vmatpush.msra.mxu0 0.0
        %1273 = vmatpush.msra.mxu0 0.0
        %1274 = vmatpush.msra.mxu0 0.0
        %1275 = vmatpush.msra.mxu0 0.0
        %1276 = vmatpush.msra.mxu0 0.0
        %1277 = vmatpush.msra.mxu0 0.0
        %1278 = vmatpush.msra.mxu0 0.0
        %1279 = vmatpush.msra.mxu0 0.0
        %1280 = vmatpush.msra.mxu0 0.0
        %1281 = vmatpush.msra.mxu0 %v611
        %1282 = vmatpush.msra.mxu0 %v610
        %1283 = vmatpush.msra.mxu0 %v609
        %1284 = vmatpush.msra.mxu0 %v608
        %1285 = vmatmul.f32.gmra.mxu0 %v1221
        %v1286 = vpop.f32.mrf.mxu0
        %v1287 = vadd.f32 0.0, %v1286
        %1288 = vdwg.mxu0
        %v1289 = vadd.f32 %v1268, %v1287
        %v1290 = vxor.u32 %v1289, 2147483648
        %v1291 = vmul.f32 %v1290, 1.442695
        %v1292 = vpow.pop %v1291
        %v1293 = vadd.f32 %v1292, 1.0
        %v1294 = vrcp.pop %v1293
        %v1295 = vmul.f32 %v1293, %v1294
        %v1296 = vsub.f32 1.0, %v1295
        %v1297 = vmul.f32 %v1294, %v1296
        %v1298 = vadd.f32 %v1294, %v1297
        %vm1299 = vweird.f32 %v1293
        %vm1300 = vweird.f32 %v1294
        %vm1301 = vmor %vm1299, %vm1300
        %v1302 = vsel %vm1301, %v1294, %v1298
        %v1303 = vand.u32 2147483647, %v1293
        %vm1304 = vcmp.eq.f32.partialorder %v1303, 8.507059e+37
        %v1305 = vand.u32 %v1293, 2147483648
        %v1306 = vor.u32 1.1754944e-38, %v1305
        %v1307 = vsel %vm1304, %v1306, %v1302
        %v1308 = vmul.f32 1.0, %v1307
        %v1309 = vsub.f32 %v1308, %v1219
        %v1310 = vmul.f32 %v1309, 0.1
        %v1311 = vadd.f32 %v1219, %v1310
        %v1313 = vsel %vm599, %v1311, 0
        %1315 = vmatpush.msra.mxu0 0.0
        %1316 = vmatpush.msra.mxu0 0.0
        %1317 = vmatpush.msra.mxu0 0.0
        %1318 = vmatpush.msra.mxu0 0.0
        %1319 = vmatpush.msra.mxu0 0.0
        %1320 = vmatpush.msra.mxu0 0.0
        %1321 = vmatpush.msra.mxu0 0.0
        %1322 = vmatpush.msra.mxu0 0.0
        %1323 = vmatpush.msra.mxu0 0.0
        %1324 = vmatpush.msra.mxu0 0.0
        %1325 = vmatpush.msra.mxu0 0.0
        %1326 = vmatpush.msra.mxu0 0.0
        %1327 = vmatpush.msra.mxu0 %v615
        %1328 = vmatpush.msra.mxu0 %v614
        %1329 = vmatpush.msra.mxu0 %v613
        %1330 = vmatpush.msra.mxu0 %v612
        %1331 = vmatmul.f32.gmra.mxu0 %v1313
        %v1332 = vpop.f32.mrf.mxu0
        %v1333 = vadd.f32 %v618, %v1332
        %1334 = vdwg.mxu0
        %v1335 = vxor.u32 %v1333, 2147483648
        %v1336 = vmul.f32 %v1335, 1.442695
        %v1337 = vpow.pop %v1336
        %v1338 = vadd.f32 %v1337, 1.0
        %v1339 = vrcp.pop %v1338
        %v1340 = vmul.f32 %v1338, %v1339
        %v1341 = vsub.f32 1.0, %v1340
        %v1342 = vmul.f32 %v1339, %v1341
        %v1343 = vadd.f32 %v1339, %v1342
        %vm1344 = vweird.f32 %v1338
        %vm1345 = vweird.f32 %v1339
        %vm1346 = vmor %vm1344, %vm1345
        %v1347 = vsel %vm1346, %v1339, %v1343
        %v1348 = vand.u32 2147483647, %v1338
        %vm1349 = vcmp.eq.f32.partialorder %v1348, 8.507059e+37
        %v1350 = vand.u32 %v1338, 2147483648
        %v1351 = vor.u32 1.1754944e-38, %v1350
        %v1352 = vsel %vm1349, %v1351, %v1347
        %v1353 = vmul.f32 1.0, %v1352
        %v1354 = vsub.f32 %v1353, %v1264
        %v1355 = vmul.f32 %v1354, 0.1
        %v1356 = vadd.f32 %v1264, %v1355
        %s1357 = scalar_lea.vmem %s504, 56 [#allocation13]
        %1358 = vst [vmem:[%s1357] sm:$0xff] %v1356
        %1359 = vst.msk [vmem:[%s511] sm:$0xff] %vm599, %v1311
        %1360 = vst [vmem:[%s518] sm:$0xff] %v1356
        %s1361 = sand.u32 %s224, 1
        %s1362 = scalar_lea.sflag [#allocation5], %s1361
        %s1363 = sand.u32 %s224, 1
        %s1364 = smul.addr %s1363, 64
        %s1365 = scalar_lea.vmem [#allocation13], %s1364
        %s1366 = sand.u32 %s33, 1
        %s1367 = scalar_lea.sflag [#allocation15], %s1366
        %s1368 = sand.u32 %s250, 1
        %s1369 = smul.addr %s1368, 8
        %s1370 = scalar_lea.vmem [#allocation14], %s1369
        %s1371 = sand.u32 %s33, 1
        %s1372 = scalar_lea.sflag [#allocation15], %s1371
        %s1373 = sand.u32 %s276, 1
        %s1374 = smul.addr %s1373, 8
        %s1375 = scalar_lea.vmem [#allocation16], %s1374
        // Predicated region
        $region77: #{tpu_custom_call.1} parent=51 // pred_check
          %p1376 = pneg %p234
        $region78: #{tpu_custom_call.1} parent=51 // pred_check_branch
          %1378 = sbr.rel (%p1376) target = $region80
        $region79: #{tpu_custom_call.1} parent=51 // pred_region
          %1380 = vsyncadd %s1362, 0
          %s1381 = smul.addr %s33, 8
          %s1382 = scalar_lea.hbm %s8, %s1381
          %s1383 = sshll.u32 %s1365, 4
          %s1384 = int_to_ptr.vmem [resolvable:$true] %s1383
          %s1385 = sshll.u32 %s1382, 4
          %s1386 = int_to_ptr.hbm [resolvable:$true] %s1385
          %1391 = dma.vmem_to_hbm [thread:$0]  %s1384, 1024, %s1386, %s1362, 128, 256, 8
        $region80: #{tpu_custom_call.1} parent=51 // pred_fallthru
          _
        // Predicated region
        $region81: #{tpu_custom_call.1} parent=51 // pred_check
          %p1392 = pneg %p260
        $region82: #{tpu_custom_call.1} parent=51 // pred_check_branch
          %1394 = sbr.rel (%p1392) target = $region84
        $region83: #{tpu_custom_call.1} parent=51 // pred_region
          %1396 = vsyncadd %s1367, 0
          %s1397 = smul.addr %s33, 8
          %s1398 = scalar_lea.hbm %s9, %s1397
          %s1400 = sshll.u32 %s1370, 4
          %s1401 = int_to_ptr.vmem [resolvable:$true] %s1400
          %s1402 = sshll.u32 %s1398, 4
          %s1403 = int_to_ptr.hbm [resolvable:$true] %s1402
          %1405 = dma.vmem_to_hbm [thread:$0]  %s1401, 128, %s1403, %s1367
        $region84: #{tpu_custom_call.1} parent=51 // pred_fallthru
          _
        // Predicated region
        $region85: #{tpu_custom_call.1} parent=51 // pred_check
          %p1406 = pneg %p286
        $region86: #{tpu_custom_call.1} parent=51 // pred_check_branch
          %1408 = sbr.rel (%p1406) target = $region88
        $region87: #{tpu_custom_call.1} parent=51 // pred_region
          %1410 = vsyncadd %s1372, 0
          %s1411 = smul.addr %s33, 8
          %s1412 = scalar_lea.hbm %s10, %s1411
          %s1414 = sshll.u32 %s1375, 4
          %s1415 = int_to_ptr.vmem [resolvable:$true] %s1414
          %s1416 = sshll.u32 %s1412, 4
          %s1417 = int_to_ptr.hbm [resolvable:$true] %s1416
          %1419 = dma.vmem_to_hbm [thread:$0]  %s1415, 128, %s1417, %s1372
        $region88: #{tpu_custom_call.1} parent=51 // pred_fallthru
          _
      $region52: #{tpu_custom_call.1} parent=5 // pred_fallthru
        _
      %p1420 = scmp.le.s32.totalorder 2, %s28
      // Predicated region
      $region89: #{tpu_custom_call.1} parent=5 // pred_check
        %p1421 = pneg %p1420
      $region90: #{tpu_custom_call.1} parent=5 // pred_check_branch
        %1423 = sbr.rel (%p1421) target = $region92
      $region91: #{tpu_custom_call.1} parent=5 // pred_region
        %s1424 = ssub.s32 %s28, 2
        // Predicated region
        $region93: #{tpu_custom_call.1} parent=91 // pred_check
          %p1425 = pneg %p240
        $region94: #{tpu_custom_call.1} parent=91 // pred_check_branch
          %1427 = sbr.rel (%p1425) target = $region96
        $region95: #{tpu_custom_call.1} parent=91 // pred_region
          %s1428 = sand.u32 %s225, 1
          %s1429 = scalar_lea.sflag [#allocation5], %s1428
          %s1430 = sand.u32 %s225, 1
          %s1431 = smul.addr %s1430, 64
          %s1432 = scalar_lea.vmem [#allocation13], %s1431
          %1434 = dma.done %s1429, 1024
        $region96: #{tpu_custom_call.1} parent=91 // pred_fallthru
          _
        // Predicated region
        $region97: #{tpu_custom_call.1} parent=91 // pred_check
          %p1435 = pneg %p266
        $region98: #{tpu_custom_call.1} parent=91 // pred_check_branch
          %1437 = sbr.rel (%p1435) target = $region100
        $region99: #{tpu_custom_call.1} parent=91 // pred_region
          %s1438 = sand.u32 %s34, 1
          %s1439 = scalar_lea.sflag [#allocation15], %s1438
          %s1440 = sand.u32 %s251, 1
          %s1441 = smul.addr %s1440, 8
          %s1442 = scalar_lea.vmem [#allocation14], %s1441
          %1444 = dma.done %s1439, 128
        $region100: #{tpu_custom_call.1} parent=91 // pred_fallthru
          _
        // Predicated region
        $region101: #{tpu_custom_call.1} parent=91 // pred_check
          %p1445 = pneg %p292
        $region102: #{tpu_custom_call.1} parent=91 // pred_check_branch
          %1447 = sbr.rel (%p1445) target = $region104
        $region103: #{tpu_custom_call.1} parent=91 // pred_region
          %s1448 = sand.u32 %s34, 1
          %s1449 = scalar_lea.sflag [#allocation15], %s1448
          %s1450 = sand.u32 %s277, 1
          %s1451 = smul.addr %s1450, 8
          %s1452 = scalar_lea.vmem [#allocation16], %s1451
          %1454 = dma.done %s1449, 128
        $region104: #{tpu_custom_call.1} parent=91 // pred_fallthru
          _
      $region92: #{tpu_custom_call.1} parent=5 // pred_fallthru
        _
    $region6: #{tpu_custom_call.1} parent=1 // loop_footer
      %s32 = sadd.s32 1, %s28
    $region7: #{tpu_custom_call.1} parent=1 // loop_footer_branch
      %27 = sbr.rel target = $region3
    $region8: #{tpu_custom_call.1} parent=1 // loop_exit
      _
    %1455 = vsyncpa [#allocation4], 1
    %s1456 = scalar_lea.sflag [#allocation4], 1
    %1457 = vsyncpa %s1456, 1
    %1458 = vsyncpa [#allocation7], 1
    %1459 = vsyncpa [#allocation10], 1
    %1460 = vsyncpa [#allocation5], 1
    %s1461 = scalar_lea.sflag [#allocation5], 1
    %1462 = vsyncpa %s1461, 1
    %1463 = vsyncpa [#allocation15], 1
    %s1464 = scalar_lea.sflag [#allocation15], 1
    %1465 = vsyncpa %s1464, 1

</llo_original>
